<compile_context>
chip_gen: v5e
topology: v5e:2x2
jax: 0.10.0
libtpu: 0.0.40
codegen_flags: <defaults>
</compile_context>

<pallas_src>
import functools

import jax
import jax.numpy as jnp
from jax.experimental import pallas as pl
from jax.experimental.pallas import tpu as pltpu

EPS = 1e-5


def _round_up(n, m):
    return ((n + m - 1) // m) * m


# ------------------------------ fused kernel --------------------------------

def cnn_fused_kernel(xc_ref, w1_ref, s1_ref, b1_ref,
                     w2_ref, s2_ref, b2_ref,
                     w3_ref, s3_ref, b3_ref,
                     lw_ref, lb_ref,
                     o_ref,
                     *, B, L1, L2, L3, L1_pad):
    """Whole network in one invocation; everything resident in VMEM.

    xc_ref: (B*L1_pad, K1)   conv1 input im2col (zero-padded rows, f32)
    w1_ref: (K1, 128)        conv1 taps (f32)
    w2_ref: (K2*128, 256)    conv2 im2col weights (tap-major, bf16)
    w3_ref: (K3*256, 128)    conv3 im2col weights (bf16)
    s*/b* : (1, C_out)       folded eval-mode BN + conv-bias affine (f32)
    lw_ref: (128, T)  lb_ref: (1, T)
    o_ref : (B, T)
    """
    C1 = w1_ref.shape[1]
    C2 = w2_ref.shape[1]
    K2 = w2_ref.shape[0] // C1
    K3 = w3_ref.shape[0] // C2

    # ---- layer 1: one MXU matmul over all batches (M = B*L1_pad) -----------
    h1 = jnp.dot(xc_ref[...], w1_ref[...], preferred_element_type=jnp.float32)
    h1 = jnp.maximum(h1 * s1_ref[...] + b1_ref[...], 0.0)    # (B*L1_pad, C1)
    # Padded rows of xc are zero -> h1 padded rows are junk but are never read
    # below (max row consumed per batch is base + (K2-1) + L2 - 1 == base+L1-1).

    w2 = w2_ref[...]
    w3 = w3_ref[...]
    s2, b2 = s2_ref[...], b2_ref[...]
    s3, b3 = s3_ref[...], b3_ref[...]
    inv_l3 = 1.0 / L3

    pooled_rows = []
    for b in range(B):                      # B is small & static -> unrolled
        base = b * L1_pad                   # 8-aligned (L1_pad % 8 == 0)

        # ---- layer 2: lane-concat im2col fed straight to one MXU dot -------
        x2c = jnp.concatenate(
            [h1[base + k:base + k + L2, :] for k in range(K2)],
            axis=-1).astype(w2.dtype)                        # (L2, K2*C1) bf16
        h2 = jnp.dot(x2c, w2, preferred_element_type=jnp.float32)
        h2 = jnp.maximum(h2 * s2 + b2, 0.0)                  # (L2, C2) f32

        # ---- layer 3: same pattern -----------------------------------------
        x3c = jnp.concatenate(
            [h2[k:k + L3, :] for k in range(K3)],
            axis=-1).astype(w3.dtype)                        # (L3, K3*C2) bf16
        h3 = jnp.dot(x3c, w3, preferred_element_type=jnp.float32)
        h3 = jnp.maximum(h3 * s3 + b3, 0.0)                  # (L3, C3) f32

        # ---- temporal mean for this batch ------------------------------------
        pooled_rows.append(jnp.sum(h3, axis=0, keepdims=True) * inv_l3)

    # ---- fused epilogue: single Linear matmul + single lane store ----------
    pooled = jnp.concatenate(pooled_rows, axis=0)            # (B, C3)
    o_ref[...] = (jnp.dot(pooled, lw_ref[...],
                          preferred_element_type=jnp.float32) + lb_ref[...])


# ------------------------------ wrapper --------------------------------------

@jax.jit
def cnn_forward_pallas(x_ncl, params):
    """x_ncl: (B, 1, L) as PyTorch Conv1d expects; params: folded weights."""
    w1, s1, b1, w2, s2, b2, w3, s3, b3, lw, lb = params
    B, c_in, L_in = x_ncl.shape
    assert c_in == 1, "fused kernel specialises the first conv to input_dim=1"
    K1, C1 = w1.shape
    C2 = w2.shape[1]
    K2 = w2.shape[0] // C1
    K3 = w3.shape[0] // C2
    T = lw.shape[1]
    L1 = L_in - K1 + 1
    L2 = L1 - K2 + 1
    L3 = L2 - K3 + 1
    L1_pad = _round_up(L1, 8)

    # Input im2col for conv1 (tiny gather done once in the XLA wrapper so the
    # first layer is a single MXU matmul in-kernel).  Padded rows are zero and
    # never consumed by later layers.
    x = x_ncl[:, 0, :]                                            # (B, L_in)
    idx = jnp.arange(L1)[:, None] + jnp.arange(K1)[None, :]       # (L1, K1)
    x_col = jnp.pad(x[:, idx], ((0, 0), (0, L1_pad - L1), (0, 0)))
    x_col = x_col.reshape(B * L1_pad, K1).astype(jnp.float32)

    vmem = functools.partial(pl.BlockSpec, memory_space=pltpu.MemorySpace.VMEM)
    kernel = functools.partial(cnn_fused_kernel,
                               B=B, L1=L1, L2=L2, L3=L3, L1_pad=L1_pad)
    return pl.pallas_call(
        kernel,
        out_shape=jax.ShapeDtypeStruct((B, T), jnp.float32),
        in_specs=[vmem() for _ in range(12)],
        out_specs=vmem(),
    )(x_col, w1, s1, b1, w2, s2, b2, w3, s3, b3, lw, lb)


# ------------------------------ parameter setup ------------------------------

def init_conv(key, c_out, c_in, k):
    k1, k2 = jax.random.split(key)
    w = 0.1 * jax.random.normal(k1, (c_out, c_in, k), jnp.float32)  # PyTorch layout
    b = 0.1 * jax.random.normal(k2, (c_out,), jnp.float32)
    return w, b


def init_bn(key, c):
    k1, k2, k3, k4 = jax.random.split(key, 4)
    gamma = 1.0 + 0.1 * jax.random.normal(k1, (c,), jnp.float32)
    beta = 0.1 * jax.random.normal(k2, (c,), jnp.float32)
    mean = 0.1 * jax.random.normal(k3, (c,), jnp.float32)
    var = 0.5 + jnp.abs(jax.random.normal(k4, (c,), jnp.float32))
    return gamma, beta, mean, var


def fold_conv_bn(w, b, gamma, beta, mean, var, *, dtype=jnp.float32):
    """PyTorch conv (C_out,C_in,K) + eval-mode BN -> (im2col W, scale, bias)."""
    c_out, c_in, k = w.shape
    w_im2col = jnp.transpose(w, (2, 1, 0)).reshape(k * c_in, c_out).astype(dtype)
    scale = gamma / jnp.sqrt(var + EPS)
    bias = beta + scale * (b - mean)
    return w_im2col, scale.reshape(1, -1), bias.reshape(1, -1)


# ------------------------------ pure-JAX reference ----------------------------

def cnn_forward_reference(x_ncl, raw_layers, lin_w_pt, lin_b):
    """Mirrors the PyTorch forward with eval-mode BatchNorm (f32 throughout)."""
    x = x_ncl
    for (w, b, gamma, beta, mean, var) in raw_layers:
        x = jax.lax.conv_general_dilated(
            x, w, window_strides=(1,), padding="VALID",
            dimension_numbers=("NCH", "OIH", "NCH")) + b[None, :, None]
        x = (x - mean[None, :, None]) / jnp.sqrt(var[None, :, None] + EPS)
        x = gamma[None, :, None] * x + beta[None, :, None]
        x = jnp.maximum(x, 0.0)
    x = x.mean(axis=2)
    return x @ lin_w_pt.T + lin_b


# ------------------------------ main ------------------------------------------

if __name__ == "__main__":
    key = jax.random.PRNGKey(0)
    B, C_in, L = 2, 1, 32          # input (B, C, L) as PyTorch Conv1d expects
    target_size = 10

    keys = jax.random.split(key, 9)
    w1, b1 = init_conv(keys[0], 128, C_in, 8)
    g1, be1, m1, v1 = init_bn(keys[1], 128)
    w2, b2 = init_conv(keys[2], 256, 128, 5)
    g2, be2, m2, v2 = init_bn(keys[3], 256)
    w3, b3 = init_conv(keys[4], 128, 256, 3)
    g3, be3, m3, v3 = init_bn(keys[5], 128)
    lin_w_pt = 0.1 * jax.random.normal(keys[6], (target_size, 128), jnp.float32)
    lin_b = 0.1 * jax.random.normal(keys[7], (target_size,), jnp.float32)

    raw_layers = [
        (w1, b1, g1, be1, m1, v1),
        (w2, b2, g2, be2, m2, v2),
        (w3, b3, g3, be3, m3, v3),
    ]
    (w1f, s1, bi1) = fold_conv_bn(*raw_layers[0])                       # f32 (tiny)
    (w2f, s2, bi2) = fold_conv_bn(*raw_layers[1], dtype=jnp.bfloat16)   # bf16 weights
    (w3f, s3, bi3) = fold_conv_bn(*raw_layers[2], dtype=jnp.bfloat16)
    params = (w1f, s1, bi1, w2f, s2, bi2, w3f, s3, bi3,
              lin_w_pt.T, lin_b.reshape(1, -1))

    x = jax.random.normal(keys[8], (B, C_in, L), jnp.float32)

    out = cnn_forward_pallas(x, params)
    out = jax.block_until_ready(out)

    ref = cnn_forward_reference(x, raw_layers, lin_w_pt, lin_b)
    ref = jax.block_until_ready(ref)

    assert out.shape == (B, target_size), out.shape
    # bf16 conv2/conv3 weights (intentional perf choice) -> ~1e-2-level error
    # vs. the f32 reference; tolerance widened accordingly.
    assert jnp.allclose(out, ref, rtol=5e-2, atol=5e-2), (
        f"mismatch: max abs err {jnp.max(jnp.abs(out - ref))}")
    print("KERNEL_OK")
</pallas_src>

<mosaic_0001>
module attributes {stable_mosaic.version = 11 : i64} {
  func.func @cnn_fused_kernel(%arg0: memref<64x8xf32, #tpu.memory_space<vmem>>, %arg1: memref<8x128xf32, #tpu.memory_space<vmem>>, %arg2: memref<1x128xf32, #tpu.memory_space<vmem>>, %arg3: memref<1x128xf32, #tpu.memory_space<vmem>>, %arg4: memref<640x256xbf16, #tpu.memory_space<vmem>>, %arg5: memref<1x256xf32, #tpu.memory_space<vmem>>, %arg6: memref<1x256xf32, #tpu.memory_space<vmem>>, %arg7: memref<768x128xbf16, #tpu.memory_space<vmem>>, %arg8: memref<1x128xf32, #tpu.memory_space<vmem>>, %arg9: memref<1x128xf32, #tpu.memory_space<vmem>>, %arg10: memref<128x10xf32, #tpu.memory_space<vmem>>, %arg11: memref<1x10xf32, #tpu.memory_space<vmem>>, %arg12: memref<2x10xf32, #tpu.memory_space<vmem>>) attributes {dimension_semantics = [], scalar_prefetch = 0 : i64, scratch_operands = 0 : i64, tpu.core_type = #tpu.core_type<tc>} {
    %c0 = arith.constant 0 : index
    %c0_0 = arith.constant 0 : index
    %0 = vector.load %arg0[%c0, %c0_0] : memref<64x8xf32, #tpu.memory_space<vmem>>, vector<64x8xf32>
    %c0_1 = arith.constant 0 : index
    %c0_2 = arith.constant 0 : index
    %1 = vector.load %arg1[%c0_1, %c0_2] : memref<8x128xf32, #tpu.memory_space<vmem>>, vector<8x128xf32>
    %cst = arith.constant dense<0.000000e+00> : vector<64x128xf32>
    %2 = tpu.matmul %0, %1, %cst {dimension_numbers = #tpu.dot_dimension_numbers<[1], [0], [0], [1], [0, 0, 1, 1], [], []>} : vector<64x8xf32>, vector<8x128xf32>, vector<64x128xf32> -> vector<64x128xf32>
    %c0_3 = arith.constant 0 : index
    %c0_4 = arith.constant 0 : index
    %3 = vector.load %arg2[%c0_3, %c0_4] : memref<1x128xf32, #tpu.memory_space<vmem>>, vector<1x128xf32>
    %4 = vector.broadcast %3 : vector<1x128xf32> to vector<64x128xf32>
    %5 = arith.mulf %2, %4 : vector<64x128xf32>
    %c0_5 = arith.constant 0 : index
    %c0_6 = arith.constant 0 : index
    %6 = vector.load %arg3[%c0_5, %c0_6] : memref<1x128xf32, #tpu.memory_space<vmem>>, vector<1x128xf32>
    %7 = vector.broadcast %6 : vector<1x128xf32> to vector<64x128xf32>
    %8 = arith.addf %5, %7 : vector<64x128xf32>
    %cst_7 = arith.constant 0.000000e+00 : f32
    %9 = vector.broadcast %cst_7 : f32 to vector<64x128xf32>
    %10 = arith.maximumf %8, %9 : vector<64x128xf32>
    %c0_8 = arith.constant 0 : index
    %c0_9 = arith.constant 0 : index
    %11 = vector.load %arg4[%c0_8, %c0_9] : memref<640x256xbf16, #tpu.memory_space<vmem>>, vector<640x256xbf16>
    %c0_10 = arith.constant 0 : index
    %c0_11 = arith.constant 0 : index
    %12 = vector.load %arg7[%c0_10, %c0_11] : memref<768x128xbf16, #tpu.memory_space<vmem>>, vector<768x128xbf16>
    %c0_12 = arith.constant 0 : index
    %c0_13 = arith.constant 0 : index
    %13 = vector.load %arg5[%c0_12, %c0_13] : memref<1x256xf32, #tpu.memory_space<vmem>>, vector<1x256xf32>
    %c0_14 = arith.constant 0 : index
    %c0_15 = arith.constant 0 : index
    %14 = vector.load %arg6[%c0_14, %c0_15] : memref<1x256xf32, #tpu.memory_space<vmem>>, vector<1x256xf32>
    %c0_16 = arith.constant 0 : index
    %c0_17 = arith.constant 0 : index
    %15 = vector.load %arg8[%c0_16, %c0_17] : memref<1x128xf32, #tpu.memory_space<vmem>>, vector<1x128xf32>
    %c0_18 = arith.constant 0 : index
    %c0_19 = arith.constant 0 : index
    %16 = vector.load %arg9[%c0_18, %c0_19] : memref<1x128xf32, #tpu.memory_space<vmem>>, vector<1x128xf32>
    %17 = vector.extract_strided_slice %10 {offsets = [0, 0], sizes = [21, 128], strides = [1, 1]} : vector<64x128xf32> to vector<21x128xf32>
    %18 = vector.extract_strided_slice %10 {offsets = [1, 0], sizes = [21, 128], strides = [1, 1]} : vector<64x128xf32> to vector<21x128xf32>
    %19 = vector.extract_strided_slice %10 {offsets = [2, 0], sizes = [21, 128], strides = [1, 1]} : vector<64x128xf32> to vector<21x128xf32>
    %20 = vector.extract_strided_slice %10 {offsets = [3, 0], sizes = [21, 128], strides = [1, 1]} : vector<64x128xf32> to vector<21x128xf32>
    %21 = vector.extract_strided_slice %10 {offsets = [4, 0], sizes = [21, 128], strides = [1, 1]} : vector<64x128xf32> to vector<21x128xf32>
    %22 = tpu.concatenate %17, %18, %19, %20, %21 in 1 : vector<21x128xf32>, vector<21x128xf32>, vector<21x128xf32>, vector<21x128xf32>, vector<21x128xf32> -> vector<21x640xf32>
    %23 = arith.truncf %22 : vector<21x640xf32> to vector<21x640xbf16>
    %cst_20 = arith.constant dense<0.000000e+00> : vector<21x256xf32>
    %24 = tpu.matmul %23, %11, %cst_20 {dimension_numbers = #tpu.dot_dimension_numbers<[1], [0], [0], [1], [0, 0, 1, 1], [], []>} : vector<21x640xbf16>, vector<640x256xbf16>, vector<21x256xf32> -> vector<21x256xf32>
    %25 = vector.broadcast %13 : vector<1x256xf32> to vector<21x256xf32>
    %26 = arith.mulf %24, %25 : vector<21x256xf32>
    %27 = vector.broadcast %14 : vector<1x256xf32> to vector<21x256xf32>
    %28 = arith.addf %26, %27 : vector<21x256xf32>
    %cst_21 = arith.constant 0.000000e+00 : f32
    %29 = vector.broadcast %cst_21 : f32 to vector<21x256xf32>
    %30 = arith.maximumf %28, %29 : vector<21x256xf32>
    %31 = vector.extract_strided_slice %30 {offsets = [0, 0], sizes = [19, 256], strides = [1, 1]} : vector<21x256xf32> to vector<19x256xf32>
    %32 = vector.extract_strided_slice %30 {offsets = [1, 0], sizes = [19, 256], strides = [1, 1]} : vector<21x256xf32> to vector<19x256xf32>
    %33 = vector.extract_strided_slice %30 {offsets = [2, 0], sizes = [19, 256], strides = [1, 1]} : vector<21x256xf32> to vector<19x256xf32>
    %34 = tpu.concatenate %31, %32, %33 in 1 : vector<19x256xf32>, vector<19x256xf32>, vector<19x256xf32> -> vector<19x768xf32>
    %35 = arith.truncf %34 : vector<19x768xf32> to vector<19x768xbf16>
    %cst_22 = arith.constant dense<0.000000e+00> : vector<19x128xf32>
    %36 = tpu.matmul %35, %12, %cst_22 {dimension_numbers = #tpu.dot_dimension_numbers<[1], [0], [0], [1], [0, 0, 1, 1], [], []>} : vector<19x768xbf16>, vector<768x128xbf16>, vector<19x128xf32> -> vector<19x128xf32>
    %37 = vector.broadcast %15 : vector<1x128xf32> to vector<19x128xf32>
    %38 = arith.mulf %36, %37 : vector<19x128xf32>
    %39 = vector.broadcast %16 : vector<1x128xf32> to vector<19x128xf32>
    %40 = arith.addf %38, %39 : vector<19x128xf32>
    %cst_23 = arith.constant 0.000000e+00 : f32
    %41 = vector.broadcast %cst_23 : f32 to vector<19x128xf32>
    %42 = arith.maximumf %40, %41 : vector<19x128xf32>
    %cst_24 = arith.constant dense<0.000000e+00> : vector<128xf32>
    %43 = vector.multi_reduction <add>, %42, %cst_24 [0] : vector<19x128xf32> to vector<128xf32>
    %44 = vector.shape_cast %43 : vector<128xf32> to vector<1x128xf32>
    %cst_25 = arith.constant 0.0526315793 : f32
    %45 = vector.broadcast %cst_25 : f32 to vector<1x128xf32>
    %46 = arith.mulf %44, %45 : vector<1x128xf32>
    %47 = vector.extract_strided_slice %10 {offsets = [32, 0], sizes = [21, 128], strides = [1, 1]} : vector<64x128xf32> to vector<21x128xf32>
    %48 = vector.extract_strided_slice %10 {offsets = [33, 0], sizes = [21, 128], strides = [1, 1]} : vector<64x128xf32> to vector<21x128xf32>
    %49 = vector.extract_strided_slice %10 {offsets = [34, 0], sizes = [21, 128], strides = [1, 1]} : vector<64x128xf32> to vector<21x128xf32>
    %50 = vector.extract_strided_slice %10 {offsets = [35, 0], sizes = [21, 128], strides = [1, 1]} : vector<64x128xf32> to vector<21x128xf32>
    %51 = vector.extract_strided_slice %10 {offsets = [36, 0], sizes = [21, 128], strides = [1, 1]} : vector<64x128xf32> to vector<21x128xf32>
    %52 = tpu.concatenate %47, %48, %49, %50, %51 in 1 : vector<21x128xf32>, vector<21x128xf32>, vector<21x128xf32>, vector<21x128xf32>, vector<21x128xf32> -> vector<21x640xf32>
    %53 = arith.truncf %52 : vector<21x640xf32> to vector<21x640xbf16>
    %cst_26 = arith.constant dense<0.000000e+00> : vector<21x256xf32>
    %54 = tpu.matmul %53, %11, %cst_26 {dimension_numbers = #tpu.dot_dimension_numbers<[1], [0], [0], [1], [0, 0, 1, 1], [], []>} : vector<21x640xbf16>, vector<640x256xbf16>, vector<21x256xf32> -> vector<21x256xf32>
    %55 = vector.broadcast %13 : vector<1x256xf32> to vector<21x256xf32>
    %56 = arith.mulf %54, %55 : vector<21x256xf32>
    %57 = vector.broadcast %14 : vector<1x256xf32> to vector<21x256xf32>
    %58 = arith.addf %56, %57 : vector<21x256xf32>
    %cst_27 = arith.constant 0.000000e+00 : f32
    %59 = vector.broadcast %cst_27 : f32 to vector<21x256xf32>
    %60 = arith.maximumf %58, %59 : vector<21x256xf32>
    %61 = vector.extract_strided_slice %60 {offsets = [0, 0], sizes = [19, 256], strides = [1, 1]} : vector<21x256xf32> to vector<19x256xf32>
    %62 = vector.extract_strided_slice %60 {offsets = [1, 0], sizes = [19, 256], strides = [1, 1]} : vector<21x256xf32> to vector<19x256xf32>
    %63 = vector.extract_strided_slice %60 {offsets = [2, 0], sizes = [19, 256], strides = [1, 1]} : vector<21x256xf32> to vector<19x256xf32>
    %64 = tpu.concatenate %61, %62, %63 in 1 : vector<19x256xf32>, vector<19x256xf32>, vector<19x256xf32> -> vector<19x768xf32>
    %65 = arith.truncf %64 : vector<19x768xf32> to vector<19x768xbf16>
    %cst_28 = arith.constant dense<0.000000e+00> : vector<19x128xf32>
    %66 = tpu.matmul %65, %12, %cst_28 {dimension_numbers = #tpu.dot_dimension_numbers<[1], [0], [0], [1], [0, 0, 1, 1], [], []>} : vector<19x768xbf16>, vector<768x128xbf16>, vector<19x128xf32> -> vector<19x128xf32>
    %67 = vector.broadcast %15 : vector<1x128xf32> to vector<19x128xf32>
    %68 = arith.mulf %66, %67 : vector<19x128xf32>
    %69 = vector.broadcast %16 : vector<1x128xf32> to vector<19x128xf32>
    %70 = arith.addf %68, %69 : vector<19x128xf32>
    %cst_29 = arith.constant 0.000000e+00 : f32
    %71 = vector.broadcast %cst_29 : f32 to vector<19x128xf32>
    %72 = arith.maximumf %70, %71 : vector<19x128xf32>
    %cst_30 = arith.constant dense<0.000000e+00> : vector<128xf32>
    %73 = vector.multi_reduction <add>, %72, %cst_30 [0] : vector<19x128xf32> to vector<128xf32>
    %74 = vector.shape_cast %73 : vector<128xf32> to vector<1x128xf32>
    %cst_31 = arith.constant 0.0526315793 : f32
    %75 = vector.broadcast %cst_31 : f32 to vector<1x128xf32>
    %76 = arith.mulf %74, %75 : vector<1x128xf32>
    %77 = tpu.concatenate %46, %76 in 0 : vector<1x128xf32>, vector<1x128xf32> -> vector<2x128xf32>
    %c0_32 = arith.constant 0 : index
    %c0_33 = arith.constant 0 : index
    %78 = vector.load %arg10[%c0_32, %c0_33] : memref<128x10xf32, #tpu.memory_space<vmem>>, vector<128x10xf32>
    %cst_34 = arith.constant dense<0.000000e+00> : vector<2x10xf32>
    %79 = tpu.matmul %77, %78, %cst_34 {dimension_numbers = #tpu.dot_dimension_numbers<[1], [0], [0], [1], [0, 0, 1, 1], [], []>} : vector<2x128xf32>, vector<128x10xf32>, vector<2x10xf32> -> vector<2x10xf32>
    %c0_35 = arith.constant 0 : index
    %c0_36 = arith.constant 0 : index
    %80 = vector.load %arg11[%c0_35, %c0_36] : memref<1x10xf32, #tpu.memory_space<vmem>>, vector<1x10xf32>
    %81 = vector.broadcast %80 : vector<1x10xf32> to vector<2x10xf32>
    %82 = arith.addf %79, %81 : vector<2x10xf32>
    %c0_37 = arith.constant 0 : index
    %c0_38 = arith.constant 0 : index
    %83 = vector.load %arg12[%c0_37, %c0_38] : memref<2x10xf32, #tpu.memory_space<vmem>>, vector<2x10xf32>
    tpu.vector_store %arg12[%c0_37, %c0_38], %82 {strides = array<i32>} : memref<2x10xf32, #tpu.memory_space<vmem>>, vector<2x10xf32>,
    return
  }
}

</mosaic_0001>

<llo_original>
// kernel: cnn_forward_pallas.1
$region0: #{cnn_forward_pallas.1}
  #allocation0 [shape = 'u32[]', space=smem, size = 0x4, offset = 0x4, fixed_abs, tag = 'smem constant byte address 0x4 - core index']
  #allocation1 [shape = 'u32[72,128]{1,0:T(1,128)}', space=vmem, size = 0x9000, scoped, tag = 'internal scratch']
  %s0 = inlined_call_operand.vmem [shape: f32[64,8], index: 0, kind: input, shape index: {}]
  %s1 = inlined_call_operand.vmem [shape: f32[8,128], index: 1, kind: input, shape index: {}]
  %s2 = inlined_call_operand.vmem [shape: f32[1,128], index: 2, kind: input, shape index: {}]
  %s3 = inlined_call_operand.vmem [shape: f32[1,128], index: 3, kind: input, shape index: {}]
  %s4 = inlined_call_operand.vmem [shape: bf16[640,256], index: 4, kind: input, shape index: {}]
  %s5 = inlined_call_operand.vmem [shape: f32[1,256], index: 5, kind: input, shape index: {}]
  %s6 = inlined_call_operand.vmem [shape: f32[1,256], index: 6, kind: input, shape index: {}]
  %s7 = inlined_call_operand.vmem [shape: bf16[768,128], index: 7, kind: input, shape index: {}]
  %s8 = inlined_call_operand.vmem [shape: f32[1,128], index: 8, kind: input, shape index: {}]
  %s9 = inlined_call_operand.vmem [shape: f32[1,128], index: 9, kind: input, shape index: {}]
  %s10 = inlined_call_operand.vmem [shape: f32[128,10], index: 10, kind: input, shape index: {}]
  %s11 = inlined_call_operand.vmem [shape: f32[1,10], index: 11, kind: input, shape index: {}]
  %s12 = inlined_call_operand.hbm [shape: f32[2,10], index: 12, kind: output, shape index: {}]
  %s13 = sld [smem:[#allocation0]]
  $region58: #{cnn_forward_pallas.1} parent=0
    _
  %s15 = ssub.s32 1, %s13
  %s16 = scalar_select 0, %s15, %s13
  $region1: #{cnn_forward_pallas.1} parent=0
    #allocation2 [shape = 'u8[1024]{0}', space=vmem, size = 0x400, scoped, tag = 'output window, operand 0, single buffered']
    #allocation3 [shape = 's32[1]{0}', space=sflag, size = 0x4, scoped, tag = 'scoped memory for cnn_forward_pallas.1']
    %17 = vsyncpa [#allocation3], 0
    // Predicated region
    $region2: #{cnn_forward_pallas.1} parent=1 // pred_check
      _
    $region3: #{cnn_forward_pallas.1} parent=1 // pred_check_branch
      %19 = sbr.rel (0) target = $region5
    $region4: #{cnn_forward_pallas.1} parent=1 // pred_region
      _
    $region5: #{cnn_forward_pallas.1} parent=1 // pred_fallthru
      _
    // Predicated region
    $region6: #{cnn_forward_pallas.1} parent=1 // pred_check
      _
    $region7: #{cnn_forward_pallas.1} parent=1 // pred_check_branch
      %21 = sbr.rel (0) target = $region9
    $region8: #{cnn_forward_pallas.1} parent=1 // pred_region
      _
    $region9: #{cnn_forward_pallas.1} parent=1 // pred_fallthru
      _
    // Predicated region
    $region10: #{cnn_forward_pallas.1} parent=1 // pred_check
      _
    $region11: #{cnn_forward_pallas.1} parent=1 // pred_check_branch
      %23 = sbr.rel (0) target = $region13
    $region12: #{cnn_forward_pallas.1} parent=1 // pred_region
      _
    $region13: #{cnn_forward_pallas.1} parent=1 // pred_fallthru
      _
    // Predicated region
    $region14: #{cnn_forward_pallas.1} parent=1 // pred_check
      _
    $region15: #{cnn_forward_pallas.1} parent=1 // pred_check_branch
      %25 = sbr.rel (0) target = $region17
    $region16: #{cnn_forward_pallas.1} parent=1 // pred_region
      _
    $region17: #{cnn_forward_pallas.1} parent=1 // pred_fallthru
      _
    // Predicated region
    $region18: #{cnn_forward_pallas.1} parent=1 // pred_check
      _
    $region19: #{cnn_forward_pallas.1} parent=1 // pred_check_branch
      %27 = sbr.rel (0) target = $region21
    $region20: #{cnn_forward_pallas.1} parent=1 // pred_region
      _
    $region21: #{cnn_forward_pallas.1} parent=1 // pred_fallthru
      _
    // Predicated region
    $region22: #{cnn_forward_pallas.1} parent=1 // pred_check
      _
    $region23: #{cnn_forward_pallas.1} parent=1 // pred_check_branch
      %29 = sbr.rel (0) target = $region25
    $region24: #{cnn_forward_pallas.1} parent=1 // pred_region
      _
    $region25: #{cnn_forward_pallas.1} parent=1 // pred_fallthru
      _
    // Predicated region
    $region26: #{cnn_forward_pallas.1} parent=1 // pred_check
      _
    $region27: #{cnn_forward_pallas.1} parent=1 // pred_check_branch
      %31 = sbr.rel (0) target = $region29
    $region28: #{cnn_forward_pallas.1} parent=1 // pred_region
      _
    $region29: #{cnn_forward_pallas.1} parent=1 // pred_fallthru
      _
    // Predicated region
    $region30: #{cnn_forward_pallas.1} parent=1 // pred_check
      _
    $region31: #{cnn_forward_pallas.1} parent=1 // pred_check_branch
      %33 = sbr.rel (0) target = $region33
    $region32: #{cnn_forward_pallas.1} parent=1 // pred_region
      _
    $region33: #{cnn_forward_pallas.1} parent=1 // pred_fallthru
      _
    // Predicated region
    $region34: #{cnn_forward_pallas.1} parent=1 // pred_check
      _
    $region35: #{cnn_forward_pallas.1} parent=1 // pred_check_branch
      %35 = sbr.rel (0) target = $region37
    $region36: #{cnn_forward_pallas.1} parent=1 // pred_region
      _
    $region37: #{cnn_forward_pallas.1} parent=1 // pred_fallthru
      _
    // Predicated region
    $region38: #{cnn_forward_pallas.1} parent=1 // pred_check
      _
    $region39: #{cnn_forward_pallas.1} parent=1 // pred_check_branch
      %37 = sbr.rel (0) target = $region41
    $region40: #{cnn_forward_pallas.1} parent=1 // pred_region
      _
    $region41: #{cnn_forward_pallas.1} parent=1 // pred_fallthru
      _
    // Predicated region
    $region42: #{cnn_forward_pallas.1} parent=1 // pred_check
      _
    $region43: #{cnn_forward_pallas.1} parent=1 // pred_check_branch
      %39 = sbr.rel (0) target = $region45
    $region44: #{cnn_forward_pallas.1} parent=1 // pred_region
      _
    $region45: #{cnn_forward_pallas.1} parent=1 // pred_fallthru
      _
    // Predicated region
    $region46: #{cnn_forward_pallas.1} parent=1 // pred_check
      _
    $region47: #{cnn_forward_pallas.1} parent=1 // pred_check_branch
      %41 = sbr.rel (0) target = $region49
    $region48: #{cnn_forward_pallas.1} parent=1 // pred_region
      _
    $region49: #{cnn_forward_pallas.1} parent=1 // pred_fallthru
      _
    %v42 = vld [vmem:[%s0] sm:$0xff]
    %v43 = vld [vmem:[%s0 + $0x8] sm:$0xff]
    %v44 = vld [vmem:[%s0 + $0x10] sm:$0xff]
    %v45 = vld [vmem:[%s0 + $0x18] sm:$0xff]
    %v46 = vld [vmem:[%s0 + $0x20] sm:$0xff]
    %v47 = vld [vmem:[%s0 + $0x28] sm:$0xff]
    %v48 = vld [vmem:[%s0 + $0x30] sm:$0xff]
    %v49 = vld [vmem:[%s0 + $0x38] sm:$0xff]
    %v50 = vld [vmem:[%s1] sm:$0xff]
    %vm51 = vcmask 64512
    %v53 = vsel %vm51, %v42, 0
    %v56 = vsel %vm51, %v43, 0
    %v59 = vsel %vm51, %v44, 0
    %v62 = vsel %vm51, %v45, 0
    %v65 = vsel %vm51, %v46, 0
    %v68 = vsel %vm51, %v47, 0
    %v71 = vsel %vm51, %v48, 0
    %v74 = vsel %vm51, %v49, 0
    %76 = vmatpush.msra.mxu0 0.0
    %77 = vmatpush.msra.mxu0 0.0
    %78 = vmatpush.msra.mxu0 0.0
    %79 = vmatpush.msra.mxu0 0.0
    %80 = vmatpush.msra.mxu0 0.0
    %81 = vmatpush.msra.mxu0 0.0
    %82 = vmatpush.msra.mxu0 0.0
    %83 = vmatpush.msra.mxu0 0.0
    %84 = vmatpush.msra.mxu0 0.0
    %85 = vmatpush.msra.mxu0 0.0
    %86 = vmatpush.msra.mxu0 0.0
    %87 = vmatpush.msra.mxu0 0.0
    %88 = vmatpush.msra.mxu0 0.0
    %89 = vmatpush.msra.mxu0 0.0
    %90 = vmatpush.msra.mxu0 0.0
    %91 = vmatpush.msra.mxu0 %v50
    %92 = vmatmul.f32.gmra.mxu0 %v53
    %v93 = vpop.f32.mrf.mxu0
    %v94 = vadd.f32 0.0, %v93
    %95 = vmatmul.f32.gmra.mxu0 %v56
    %v96 = vpop.f32.mrf.mxu0
    %v97 = vadd.f32 0.0, %v96
    %98 = vmatmul.f32.gmra.mxu0 %v59
    %v99 = vpop.f32.mrf.mxu0
    %v100 = vadd.f32 0.0, %v99
    %101 = vmatmul.f32.gmra.mxu0 %v62
    %v102 = vpop.f32.mrf.mxu0
    %v103 = vadd.f32 0.0, %v102
    %104 = vmatmul.f32.gmra.mxu0 %v65
    %v105 = vpop.f32.mrf.mxu0
    %v106 = vadd.f32 0.0, %v105
    %107 = vmatmul.f32.gmra.mxu0 %v68
    %v108 = vpop.f32.mrf.mxu0
    %v109 = vadd.f32 0.0, %v108
    %110 = vmatmul.f32.gmra.mxu0 %v71
    %v111 = vpop.f32.mrf.mxu0
    %v112 = vadd.f32 0.0, %v111
    %113 = vmatmul.f32.gmra.mxu0 %v74
    %v114 = vpop.f32.mrf.mxu0
    %v115 = vadd.f32 0.0, %v114
    %116 = vdwg.mxu0
    %v117 = vld [vmem:[%s2] sm:$0x1]
    %v119 = vperm.slane %v117, 0
    %v121 = vmul.f32 %v94, %v119
    %v122 = vmul.f32 %v97, %v119
    %v123 = vmul.f32 %v100, %v119
    %v124 = vmul.f32 %v103, %v119
    %v125 = vmul.f32 %v106, %v119
    %v126 = vmul.f32 %v109, %v119
    %v127 = vmul.f32 %v112, %v119
    %v128 = vmul.f32 %v115, %v119
    %v129 = vld [vmem:[%s3] sm:$0x1]
    %v131 = vperm.slane %v129, 0
    %v133 = vadd.f32 %v121, %v131
    %v134 = vadd.f32 %v122, %v131
    %v135 = vadd.f32 %v123, %v131
    %v136 = vadd.f32 %v124, %v131
    %v137 = vadd.f32 %v125, %v131
    %v138 = vadd.f32 %v126, %v131
    %v139 = vadd.f32 %v127, %v131
    %v140 = vadd.f32 %v128, %v131
    %v141 = vmax.f32 %v133, 0.0
    %v142 = vmax.f32 %v134, 0.0
    %v143 = vmax.f32 %v135, 0.0
    %v144 = vmax.f32 %v136, 0.0
    %v145 = vmax.f32 %v137, 0.0
    %v146 = vmax.f32 %v138, 0.0
    %v147 = vmax.f32 %v139, 0.0
    %v148 = vmax.f32 %v140, 0.0
    %v149 = vld [vmem:[%s4] sm:$0xff]
    %v150 = vld [vmem:[%s4 + $0x8] sm:$0xff]
    %v151 = vld [vmem:[%s4 + $0x10] sm:$0xff]
    %v152 = vld [vmem:[%s4 + $0x18] sm:$0xff]
    %v153 = vld [vmem:[%s4 + $0x20] sm:$0xff]
    %v154 = vld [vmem:[%s4 + $0x28] sm:$0xff]
    %v155 = vld [vmem:[%s4 + $0x30] sm:$0xff]
    %v156 = vld [vmem:[%s4 + $0x38] sm:$0xff]
    %v157 = vld [vmem:[%s4 + $0x40] sm:$0xff]
    %v158 = vld [vmem:[%s4 + $0x48] sm:$0xff]
    %v159 = vld [vmem:[%s4 + $0x50] sm:$0xff]
    %v160 = vld [vmem:[%s4 + $0x58] sm:$0xff]
    %v161 = vld [vmem:[%s4 + $0x60] sm:$0xff]
    %v162 = vld [vmem:[%s4 + $0x68] sm:$0xff]
    %v163 = vld [vmem:[%s4 + $0x70] sm:$0xff]
    %v164 = vld [vmem:[%s4 + $0x78] sm:$0xff]
    %v165 = vld [vmem:[%s4 + $0x80] sm:$0xff]
    %v166 = vld [vmem:[%s4 + $0x88] sm:$0xff]
    %v167 = vld [vmem:[%s4 + $0x90] sm:$0xff]
    %v168 = vld [vmem:[%s4 + $0x98] sm:$0xff]
    %v169 = vld [vmem:[%s4 + $0xa0] sm:$0xff]
    %v170 = vld [vmem:[%s4 + $0xa8] sm:$0xff]
    %v171 = vld [vmem:[%s4 + $0xb0] sm:$0xff]
    %v172 = vld [vmem:[%s4 + $0xb8] sm:$0xff]
    %v173 = vld [vmem:[%s4 + $0xc0] sm:$0xff]
    %v174 = vld [vmem:[%s4 + $0xc8] sm:$0xff]
    %v175 = vld [vmem:[%s4 + $0xd0] sm:$0xff]
    %v176 = vld [vmem:[%s4 + $0xd8] sm:$0xff]
    %v177 = vld [vmem:[%s4 + $0xe0] sm:$0xff]
    %v178 = vld [vmem:[%s4 + $0xe8] sm:$0xff]
    %v179 = vld [vmem:[%s4 + $0xf0] sm:$0xff]
    %v180 = vld [vmem:[%s4 + $0xf8] sm:$0xff]
    %v181 = vld [vmem:[%s4 + $0x100] sm:$0xff]
    %v182 = vld [vmem:[%s4 + $0x108] sm:$0xff]
    %v183 = vld [vmem:[%s4 + $0x110] sm:$0xff]
    %v184 = vld [vmem:[%s4 + $0x118] sm:$0xff]
    %v185 = vld [vmem:[%s4 + $0x120] sm:$0xff]
    %v186 = vld [vmem:[%s4 + $0x128] sm:$0xff]
    %v187 = vld [vmem:[%s4 + $0x130] sm:$0xff]
    %v188 = vld [vmem:[%s4 + $0x138] sm:$0xff]
    %v189 = vld [vmem:[%s4 + $0x140] sm:$0xff]
    %v190 = vld [vmem:[%s4 + $0x148] sm:$0xff]
    %v191 = vld [vmem:[%s4 + $0x150] sm:$0xff]
    %v192 = vld [vmem:[%s4 + $0x158] sm:$0xff]
    %v193 = vld [vmem:[%s4 + $0x160] sm:$0xff]
    %v194 = vld [vmem:[%s4 + $0x168] sm:$0xff]
    %v195 = vld [vmem:[%s4 + $0x170] sm:$0xff]
    %v196 = vld [vmem:[%s4 + $0x178] sm:$0xff]
    %v197 = vld [vmem:[%s4 + $0x180] sm:$0xff]
    %v198 = vld [vmem:[%s4 + $0x188] sm:$0xff]
    %v199 = vld [vmem:[%s4 + $0x190] sm:$0xff]
    %v200 = vld [vmem:[%s4 + $0x198] sm:$0xff]
    %v201 = vld [vmem:[%s4 + $0x1a0] sm:$0xff]
    %v202 = vld [vmem:[%s4 + $0x1a8] sm:$0xff]
    %v203 = vld [vmem:[%s4 + $0x1b0] sm:$0xff]
    %v204 = vld [vmem:[%s4 + $0x1b8] sm:$0xff]
    %v205 = vld [vmem:[%s4 + $0x1c0] sm:$0xff]
    %v206 = vld [vmem:[%s4 + $0x1c8] sm:$0xff]
    %v207 = vld [vmem:[%s4 + $0x1d0] sm:$0xff]
    %v208 = vld [vmem:[%s4 + $0x1d8] sm:$0xff]
    %v209 = vld [vmem:[%s4 + $0x1e0] sm:$0xff]
    %v210 = vld [vmem:[%s4 + $0x1e8] sm:$0xff]
    %v211 = vld [vmem:[%s4 + $0x1f0] sm:$0xff]
    %v212 = vld [vmem:[%s4 + $0x1f8] sm:$0xff]
    %v213 = vld [vmem:[%s4 + $0x200] sm:$0xff]
    %v214 = vld [vmem:[%s4 + $0x208] sm:$0xff]
    %v215 = vld [vmem:[%s4 + $0x210] sm:$0xff]
    %v216 = vld [vmem:[%s4 + $0x218] sm:$0xff]
    %v217 = vld [vmem:[%s4 + $0x220] sm:$0xff]
    %v218 = vld [vmem:[%s4 + $0x228] sm:$0xff]
    %v219 = vld [vmem:[%s4 + $0x230] sm:$0xff]
    %v220 = vld [vmem:[%s4 + $0x238] sm:$0xff]
    %v221 = vld [vmem:[%s4 + $0x240] sm:$0xff]
    %v222 = vld [vmem:[%s4 + $0x248] sm:$0xff]
    %v223 = vld [vmem:[%s4 + $0x250] sm:$0xff]
    %v224 = vld [vmem:[%s4 + $0x258] sm:$0xff]
    %v225 = vld [vmem:[%s4 + $0x260] sm:$0xff]
    %v226 = vld [vmem:[%s4 + $0x268] sm:$0xff]
    %v227 = vld [vmem:[%s4 + $0x270] sm:$0xff]
    %v228 = vld [vmem:[%s4 + $0x278] sm:$0xff]
    %v229 = vld [vmem:[%s7] sm:$0xf]
    %v230 = vld [vmem:[%s7 + $0x4] sm:$0xf]
    %v231 = vld [vmem:[%s7 + $0x8] sm:$0xf]
    %v232 = vld [vmem:[%s7 + $0xc] sm:$0xf]
    %v233 = vld [vmem:[%s7 + $0x10] sm:$0xf]
    %v234 = vld [vmem:[%s7 + $0x14] sm:$0xf]
    %v235 = vld [vmem:[%s7 + $0x18] sm:$0xf]
    %v236 = vld [vmem:[%s7 + $0x1c] sm:$0xf]
    %v237 = vld [vmem:[%s7 + $0x20] sm:$0xf]
    %v238 = vld [vmem:[%s7 + $0x24] sm:$0xf]
    %v239 = vld [vmem:[%s7 + $0x28] sm:$0xf]
    %v240 = vld [vmem:[%s7 + $0x2c] sm:$0xf]
    %v241 = vld [vmem:[%s7 + $0x30] sm:$0xf]
    %v242 = vld [vmem:[%s7 + $0x34] sm:$0xf]
    %v243 = vld [vmem:[%s7 + $0x38] sm:$0xf]
    %v244 = vld [vmem:[%s7 + $0x3c] sm:$0xf]
    %v245 = vld [vmem:[%s7 + $0x40] sm:$0xf]
    %v246 = vld [vmem:[%s7 + $0x44] sm:$0xf]
    %v247 = vld [vmem:[%s7 + $0x48] sm:$0xf]
    %v248 = vld [vmem:[%s7 + $0x4c] sm:$0xf]
    %v249 = vld [vmem:[%s7 + $0x50] sm:$0xf]
    %v250 = vld [vmem:[%s7 + $0x54] sm:$0xf]
    %v251 = vld [vmem:[%s7 + $0x58] sm:$0xf]
    %v252 = vld [vmem:[%s7 + $0x5c] sm:$0xf]
    %v253 = vld [vmem:[%s7 + $0x60] sm:$0xf]
    %v254 = vld [vmem:[%s7 + $0x64] sm:$0xf]
    %v255 = vld [vmem:[%s7 + $0x68] sm:$0xf]
    %v256 = vld [vmem:[%s7 + $0x6c] sm:$0xf]
    %v257 = vld [vmem:[%s7 + $0x70] sm:$0xf]
    %v258 = vld [vmem:[%s7 + $0x74] sm:$0xf]
    %v259 = vld [vmem:[%s7 + $0x78] sm:$0xf]
    %v260 = vld [vmem:[%s7 + $0x7c] sm:$0xf]
    %v261 = vld [vmem:[%s7 + $0x80] sm:$0xf]
    %v262 = vld [vmem:[%s7 + $0x84] sm:$0xf]
    %v263 = vld [vmem:[%s7 + $0x88] sm:$0xf]
    %v264 = vld [vmem:[%s7 + $0x8c] sm:$0xf]
    %v265 = vld [vmem:[%s7 + $0x90] sm:$0xf]
    %v266 = vld [vmem:[%s7 + $0x94] sm:$0xf]
    %v267 = vld [vmem:[%s7 + $0x98] sm:$0xf]
    %v268 = vld [vmem:[%s7 + $0x9c] sm:$0xf]
    %v269 = vld [vmem:[%s7 + $0xa0] sm:$0xf]
    %v270 = vld [vmem:[%s7 + $0xa4] sm:$0xf]
    %v271 = vld [vmem:[%s7 + $0xa8] sm:$0xf]
    %v272 = vld [vmem:[%s7 + $0xac] sm:$0xf]
    %v273 = vld [vmem:[%s7 + $0xb0] sm:$0xf]
    %v274 = vld [vmem:[%s7 + $0xb4] sm:$0xf]
    %v275 = vld [vmem:[%s7 + $0xb8] sm:$0xf]
    %v276 = vld [vmem:[%s7 + $0xbc] sm:$0xf]
    %v277 = vld [vmem:[%s7 + $0xc0] sm:$0xf]
    %v278 = vld [vmem:[%s7 + $0xc4] sm:$0xf]
    %v279 = vld [vmem:[%s7 + $0xc8] sm:$0xf]
    %v280 = vld [vmem:[%s7 + $0xcc] sm:$0xf]
    %v281 = vld [vmem:[%s7 + $0xd0] sm:$0xf]
    %v282 = vld [vmem:[%s7 + $0xd4] sm:$0xf]
    %v283 = vld [vmem:[%s7 + $0xd8] sm:$0xf]
    %v284 = vld [vmem:[%s7 + $0xdc] sm:$0xf]
    %v285 = vld [vmem:[%s7 + $0xe0] sm:$0xf]
    %v286 = vld [vmem:[%s7 + $0xe4] sm:$0xf]
    %v287 = vld [vmem:[%s7 + $0xe8] sm:$0xf]
    %v288 = vld [vmem:[%s7 + $0xec] sm:$0xf]
    %v289 = vld [vmem:[%s7 + $0xf0] sm:$0xf]
    %v290 = vld [vmem:[%s7 + $0xf4] sm:$0xf]
    %v291 = vld [vmem:[%s7 + $0xf8] sm:$0xf]
    %v292 = vld [vmem:[%s7 + $0xfc] sm:$0xf]
    %v293 = vld [vmem:[%s7 + $0x100] sm:$0xf]
    %v294 = vld [vmem:[%s7 + $0x104] sm:$0xf]
    %v295 = vld [vmem:[%s7 + $0x108] sm:$0xf]
    %v296 = vld [vmem:[%s7 + $0x10c] sm:$0xf]
    %v297 = vld [vmem:[%s7 + $0x110] sm:$0xf]
    %v298 = vld [vmem:[%s7 + $0x114] sm:$0xf]
    %v299 = vld [vmem:[%s7 + $0x118] sm:$0xf]
    %v300 = vld [vmem:[%s7 + $0x11c] sm:$0xf]
    %v301 = vld [vmem:[%s7 + $0x120] sm:$0xf]
    %v302 = vld [vmem:[%s7 + $0x124] sm:$0xf]
    %v303 = vld [vmem:[%s7 + $0x128] sm:$0xf]
    %v304 = vld [vmem:[%s7 + $0x12c] sm:$0xf]
    %v305 = vld [vmem:[%s7 + $0x130] sm:$0xf]
    %v306 = vld [vmem:[%s7 + $0x134] sm:$0xf]
    %v307 = vld [vmem:[%s7 + $0x138] sm:$0xf]
    %v308 = vld [vmem:[%s7 + $0x13c] sm:$0xf]
    %v309 = vld [vmem:[%s7 + $0x140] sm:$0xf]
    %v310 = vld [vmem:[%s7 + $0x144] sm:$0xf]
    %v311 = vld [vmem:[%s7 + $0x148] sm:$0xf]
    %v312 = vld [vmem:[%s7 + $0x14c] sm:$0xf]
    %v313 = vld [vmem:[%s7 + $0x150] sm:$0xf]
    %v314 = vld [vmem:[%s7 + $0x154] sm:$0xf]
    %v315 = vld [vmem:[%s7 + $0x158] sm:$0xf]
    %v316 = vld [vmem:[%s7 + $0x15c] sm:$0xf]
    %v317 = vld [vmem:[%s7 + $0x160] sm:$0xf]
    %v318 = vld [vmem:[%s7 + $0x164] sm:$0xf]
    %v319 = vld [vmem:[%s7 + $0x168] sm:$0xf]
    %v320 = vld [vmem:[%s7 + $0x16c] sm:$0xf]
    %v321 = vld [vmem:[%s7 + $0x170] sm:$0xf]
    %v322 = vld [vmem:[%s7 + $0x174] sm:$0xf]
    %v323 = vld [vmem:[%s7 + $0x178] sm:$0xf]
    %v324 = vld [vmem:[%s7 + $0x17c] sm:$0xf]
    %v325 = vld [vmem:[%s5] sm:$0x3]
    %v326 = vld [vmem:[%s6] sm:$0x3]
    %v327 = vld [vmem:[%s8] sm:$0x1]
    %v328 = vld [vmem:[%s9] sm:$0x1]
    %vm332 = vcmask 1046528
    %v333 = vrot.slane %v141, 1
    %v334 = vrot.slane %v142, 1
    %v335 = vsel %vm332, %v333, %v334
    %v336 = vrot.slane %v143, 1
    %v337 = vsel %vm332, %v334, %v336
    %vm341 = vcmask 1045504
    %v342 = vrot.slane %v141, 2
    %v343 = vrot.slane %v142, 2
    %v344 = vsel %vm341, %v342, %v343
    %v345 = vrot.slane %v143, 2
    %v346 = vsel %vm341, %v343, %v345
    %vm350 = vcmask 1044480
    %v351 = vrot.slane %v141, 3
    %v352 = vrot.slane %v142, 3
    %v353 = vsel %vm350, %v351, %v352
    %v354 = vrot.slane %v143, 3
    %v355 = vsel %vm350, %v352, %v354
    %vm360 = vcmask 1043456
    %v361 = vrot.slane %v141, 4
    %v362 = vrot.slane %v142, 4
    %v363 = vsel %vm360, %v361, %v362
    %v364 = vrot.slane %v143, 4
    %v365 = vsel %vm360, %v362, %v364
    %v366 = vrot.slane %v144, 4
    %v367 = vsel %vm360, %v364, %v366
    %v371 = vpack.c.bf16 %v142, %v141
    %v372 = vpack.c.bf16 %v337, %v335
    %v373 = vpack.c.bf16 %v346, %v344
    %v374 = vpack.c.bf16 %v355, %v353
    %v375 = vpack.c.bf16 %v365, %v363
    %v376 = vpack.c.bf16 %v143, %v143
    %v377 = vpack.c.bf16 %v336, %v336
    %v378 = vpack.c.bf16 %v345, %v345
    %v379 = vpack.c.bf16 %v354, %v354
    %v380 = vpack.c.bf16 %v367, %v367
    %v461 = vunpack.c.l.b16 %v149
    %v462 = vunpack.c.h.b16 %v149
    %v463 = vunpack.c.l.b16 %v150
    %v464 = vunpack.c.h.b16 %v150
    %v465 = vunpack.c.l.b16 %v151
    %v466 = vunpack.c.h.b16 %v151
    %v467 = vunpack.c.l.b16 %v152
    %v468 = vunpack.c.h.b16 %v152
    %v469 = vunpack.c.l.b16 %v153
    %v470 = vunpack.c.h.b16 %v153
    %v471 = vunpack.c.l.b16 %v154
    %v472 = vunpack.c.h.b16 %v154
    %v473 = vunpack.c.l.b16 %v155
    %v474 = vunpack.c.h.b16 %v155
    %v475 = vunpack.c.l.b16 %v156
    %v476 = vunpack.c.h.b16 %v156
    %v477 = vunpack.c.l.b16 %v157
    %v478 = vunpack.c.h.b16 %v157
    %v479 = vunpack.c.l.b16 %v158
    %v480 = vunpack.c.h.b16 %v158
    %v481 = vunpack.c.l.b16 %v159
    %v482 = vunpack.c.h.b16 %v159
    %v483 = vunpack.c.l.b16 %v160
    %v484 = vunpack.c.h.b16 %v160
    %v485 = vunpack.c.l.b16 %v161
    %v486 = vunpack.c.h.b16 %v161
    %v487 = vunpack.c.l.b16 %v162
    %v488 = vunpack.c.h.b16 %v162
    %v489 = vunpack.c.l.b16 %v163
    %v490 = vunpack.c.h.b16 %v163
    %v491 = vunpack.c.l.b16 %v164
    %v492 = vunpack.c.h.b16 %v164
    %v493 = vunpack.c.l.b16 %v165
    %v494 = vunpack.c.h.b16 %v165
    %v495 = vunpack.c.l.b16 %v166
    %v496 = vunpack.c.h.b16 %v166
    %v497 = vunpack.c.l.b16 %v167
    %v498 = vunpack.c.h.b16 %v167
    %v499 = vunpack.c.l.b16 %v168
    %v500 = vunpack.c.h.b16 %v168
    %v501 = vunpack.c.l.b16 %v169
    %v502 = vunpack.c.h.b16 %v169
    %v503 = vunpack.c.l.b16 %v170
    %v504 = vunpack.c.h.b16 %v170
    %v505 = vunpack.c.l.b16 %v171
    %v506 = vunpack.c.h.b16 %v171
    %v507 = vunpack.c.l.b16 %v172
    %v508 = vunpack.c.h.b16 %v172
    %v509 = vunpack.c.l.b16 %v173
    %v510 = vunpack.c.h.b16 %v173
    %v511 = vunpack.c.l.b16 %v174
    %v512 = vunpack.c.h.b16 %v174
    %v513 = vunpack.c.l.b16 %v175
    %v514 = vunpack.c.h.b16 %v175
    %v515 = vunpack.c.l.b16 %v176
    %v516 = vunpack.c.h.b16 %v176
    %v517 = vunpack.c.l.b16 %v177
    %v518 = vunpack.c.h.b16 %v177
    %v519 = vunpack.c.l.b16 %v178
    %v520 = vunpack.c.h.b16 %v178
    %v521 = vunpack.c.l.b16 %v179
    %v522 = vunpack.c.h.b16 %v179
    %v523 = vunpack.c.l.b16 %v180
    %v524 = vunpack.c.h.b16 %v180
    %v525 = vunpack.c.l.b16 %v181
    %v526 = vunpack.c.h.b16 %v181
    %v527 = vunpack.c.l.b16 %v182
    %v528 = vunpack.c.h.b16 %v182
    %v529 = vunpack.c.l.b16 %v183
    %v530 = vunpack.c.h.b16 %v183
    %v531 = vunpack.c.l.b16 %v184
    %v532 = vunpack.c.h.b16 %v184
    %v533 = vunpack.c.l.b16 %v185
    %v534 = vunpack.c.h.b16 %v185
    %v535 = vunpack.c.l.b16 %v186
    %v536 = vunpack.c.h.b16 %v186
    %v537 = vunpack.c.l.b16 %v187
    %v538 = vunpack.c.h.b16 %v187
    %v539 = vunpack.c.l.b16 %v188
    %v540 = vunpack.c.h.b16 %v188
    %v541 = vunpack.c.l.b16 %v189
    %v542 = vunpack.c.h.b16 %v189
    %v543 = vunpack.c.l.b16 %v190
    %v544 = vunpack.c.h.b16 %v190
    %v545 = vunpack.c.l.b16 %v191
    %v546 = vunpack.c.h.b16 %v191
    %v547 = vunpack.c.l.b16 %v192
    %v548 = vunpack.c.h.b16 %v192
    %v549 = vunpack.c.l.b16 %v193
    %v550 = vunpack.c.h.b16 %v193
    %v551 = vunpack.c.l.b16 %v194
    %v552 = vunpack.c.h.b16 %v194
    %v553 = vunpack.c.l.b16 %v195
    %v554 = vunpack.c.h.b16 %v195
    %v555 = vunpack.c.l.b16 %v196
    %v556 = vunpack.c.h.b16 %v196
    %v557 = vunpack.c.l.b16 %v197
    %v558 = vunpack.c.h.b16 %v197
    %v559 = vunpack.c.l.b16 %v198
    %v560 = vunpack.c.h.b16 %v198
    %v561 = vunpack.c.l.b16 %v199
    %v562 = vunpack.c.h.b16 %v199
    %v563 = vunpack.c.l.b16 %v200
    %v564 = vunpack.c.h.b16 %v200
    %v565 = vunpack.c.l.b16 %v201
    %v566 = vunpack.c.h.b16 %v201
    %v567 = vunpack.c.l.b16 %v202
    %v568 = vunpack.c.h.b16 %v202
    %v569 = vunpack.c.l.b16 %v203
    %v570 = vunpack.c.h.b16 %v203
    %v571 = vunpack.c.l.b16 %v204
    %v572 = vunpack.c.h.b16 %v204
    %v573 = vunpack.c.l.b16 %v205
    %v574 = vunpack.c.h.b16 %v205
    %v575 = vunpack.c.l.b16 %v206
    %v576 = vunpack.c.h.b16 %v206
    %v577 = vunpack.c.l.b16 %v207
    %v578 = vunpack.c.h.b16 %v207
    %v579 = vunpack.c.l.b16 %v208
    %v580 = vunpack.c.h.b16 %v208
    %v581 = vunpack.c.l.b16 %v209
    %v582 = vunpack.c.h.b16 %v209
    %v583 = vunpack.c.l.b16 %v210
    %v584 = vunpack.c.h.b16 %v210
    %v585 = vunpack.c.l.b16 %v211
    %v586 = vunpack.c.h.b16 %v211
    %v587 = vunpack.c.l.b16 %v212
    %v588 = vunpack.c.h.b16 %v212
    %v589 = vunpack.c.l.b16 %v213
    %v590 = vunpack.c.h.b16 %v213
    %v591 = vunpack.c.l.b16 %v214
    %v592 = vunpack.c.h.b16 %v214
    %v593 = vunpack.c.l.b16 %v215
    %v594 = vunpack.c.h.b16 %v215
    %v595 = vunpack.c.l.b16 %v216
    %v596 = vunpack.c.h.b16 %v216
    %v597 = vunpack.c.l.b16 %v217
    %v598 = vunpack.c.h.b16 %v217
    %v599 = vunpack.c.l.b16 %v218
    %v600 = vunpack.c.h.b16 %v218
    %v601 = vunpack.c.l.b16 %v219
    %v602 = vunpack.c.h.b16 %v219
    %v603 = vunpack.c.l.b16 %v220
    %v604 = vunpack.c.h.b16 %v220
    %v605 = vunpack.c.l.b16 %v221
    %v606 = vunpack.c.h.b16 %v221
    %v607 = vunpack.c.l.b16 %v222
    %v608 = vunpack.c.h.b16 %v222
    %v609 = vunpack.c.l.b16 %v223
    %v610 = vunpack.c.h.b16 %v223
    %v611 = vunpack.c.l.b16 %v224
    %v612 = vunpack.c.h.b16 %v224
    %v613 = vunpack.c.l.b16 %v225
    %v614 = vunpack.c.h.b16 %v225
    %v615 = vunpack.c.l.b16 %v226
    %v616 = vunpack.c.h.b16 %v226
    %v617 = vunpack.c.l.b16 %v227
    %v618 = vunpack.c.h.b16 %v227
    %v619 = vunpack.c.l.b16 %v228
    %v620 = vunpack.c.h.b16 %v228
    %v621 = vpack.c.b16 %v463, %v461
    %v622 = vpack.c.b16 %v464, %v462
    %v623 = vpack.c.b16 %v467, %v465
    %v624 = vpack.c.b16 %v468, %v466
    %v625 = vpack.c.b16 %v471, %v469
    %v626 = vpack.c.b16 %v472, %v470
    %v627 = vpack.c.b16 %v475, %v473
    %v628 = vpack.c.b16 %v476, %v474
    %v629 = vpack.c.b16 %v479, %v477
    %v630 = vpack.c.b16 %v480, %v478
    %v631 = vpack.c.b16 %v483, %v481
    %v632 = vpack.c.b16 %v484, %v482
    %v633 = vpack.c.b16 %v487, %v485
    %v634 = vpack.c.b16 %v488, %v486
    %v635 = vpack.c.b16 %v491, %v489
    %v636 = vpack.c.b16 %v492, %v490
    %v637 = vpack.c.b16 %v495, %v493
    %v638 = vpack.c.b16 %v496, %v494
    %v639 = vpack.c.b16 %v499, %v497
    %v640 = vpack.c.b16 %v500, %v498
    %v641 = vpack.c.b16 %v503, %v501
    %v642 = vpack.c.b16 %v504, %v502
    %v643 = vpack.c.b16 %v507, %v505
    %v644 = vpack.c.b16 %v508, %v506
    %v645 = vpack.c.b16 %v511, %v509
    %v646 = vpack.c.b16 %v512, %v510
    %v647 = vpack.c.b16 %v515, %v513
    %v648 = vpack.c.b16 %v516, %v514
    %v649 = vpack.c.b16 %v519, %v517
    %v650 = vpack.c.b16 %v520, %v518
    %v651 = vpack.c.b16 %v523, %v521
    %v652 = vpack.c.b16 %v524, %v522
    %v653 = vpack.c.b16 %v527, %v525
    %v654 = vpack.c.b16 %v528, %v526
    %v655 = vpack.c.b16 %v531, %v529
    %v656 = vpack.c.b16 %v532, %v530
    %v657 = vpack.c.b16 %v535, %v533
    %v658 = vpack.c.b16 %v536, %v534
    %v659 = vpack.c.b16 %v539, %v537
    %v660 = vpack.c.b16 %v540, %v538
    %v661 = vpack.c.b16 %v543, %v541
    %v662 = vpack.c.b16 %v544, %v542
    %v663 = vpack.c.b16 %v547, %v545
    %v664 = vpack.c.b16 %v548, %v546
    %v665 = vpack.c.b16 %v551, %v549
    %v666 = vpack.c.b16 %v552, %v550
    %v667 = vpack.c.b16 %v555, %v553
    %v668 = vpack.c.b16 %v556, %v554
    %v669 = vpack.c.b16 %v559, %v557
    %v670 = vpack.c.b16 %v560, %v558
    %v671 = vpack.c.b16 %v563, %v561
    %v672 = vpack.c.b16 %v564, %v562
    %v673 = vpack.c.b16 %v567, %v565
    %v674 = vpack.c.b16 %v568, %v566
    %v675 = vpack.c.b16 %v571, %v569
    %v676 = vpack.c.b16 %v572, %v570
    %v677 = vpack.c.b16 %v575, %v573
    %v678 = vpack.c.b16 %v576, %v574
    %v679 = vpack.c.b16 %v579, %v577
    %v680 = vpack.c.b16 %v580, %v578
    %v681 = vpack.c.b16 %v583, %v581
    %v682 = vpack.c.b16 %v584, %v582
    %v683 = vpack.c.b16 %v587, %v585
    %v684 = vpack.c.b16 %v588, %v586
    %v685 = vpack.c.b16 %v591, %v589
    %v686 = vpack.c.b16 %v592, %v590
    %v687 = vpack.c.b16 %v595, %v593
    %v688 = vpack.c.b16 %v596, %v594
    %v689 = vpack.c.b16 %v599, %v597
    %v690 = vpack.c.b16 %v600, %v598
    %v691 = vpack.c.b16 %v603, %v601
    %v692 = vpack.c.b16 %v604, %v602
    %v693 = vpack.c.b16 %v607, %v605
    %v694 = vpack.c.b16 %v608, %v606
    %v695 = vpack.c.b16 %v611, %v609
    %v696 = vpack.c.b16 %v612, %v610
    %v697 = vpack.c.b16 %v615, %v613
    %v698 = vpack.c.b16 %v616, %v614
    %v699 = vpack.c.b16 %v619, %v617
    %v700 = vpack.c.b16 %v620, %v618
    %781 = vmatpush.bf16.msra.mxu0 %v635
    %782 = vmatpush.bf16.msra.mxu0 %v633
    %783 = vmatpush.bf16.msra.mxu0 %v631
    %784 = vmatpush.bf16.msra.mxu0 %v629
    %785 = vmatpush.bf16.msra.mxu0 %v627
    %786 = vmatpush.bf16.msra.mxu0 %v625
    %787 = vmatpush.bf16.msra.mxu0 %v623
    %788 = vmatpush.bf16.msra.mxu0 %v621
    %789 = vmatmul.bf16.gmra.mxu0 %v371
    %v790 = vpop.f32.mrf.mxu0
    %v791 = vadd.f32 0.0, %v790
    %v792 = vpop.f32.mrf.mxu0
    %v793 = vadd.f32 0.0, %v792
    %794 = vmatmul.bf16.gmra.mxu0 %v376
    %v795 = vpop.f32.mrf.mxu0
    %v796 = vadd.f32 0.0, %v795
    %v797 = vpop.f32.mrf.mxu0
    %798 = vdwg.mxu0
    %799 = vmatpush.bf16.msra.mxu0 %v651
    %800 = vmatpush.bf16.msra.mxu0 %v649
    %801 = vmatpush.bf16.msra.mxu0 %v647
    %802 = vmatpush.bf16.msra.mxu0 %v645
    %803 = vmatpush.bf16.msra.mxu0 %v643
    %804 = vmatpush.bf16.msra.mxu0 %v641
    %805 = vmatpush.bf16.msra.mxu0 %v639
    %806 = vmatpush.bf16.msra.mxu0 %v637
    %807 = vmatmul.bf16.gmra.mxu0 %v372
    %v808 = vpop.f32.mrf.mxu0
    %v809 = vadd.f32 %v791, %v808
    %v810 = vpop.f32.mrf.mxu0
    %v811 = vadd.f32 %v793, %v810
    %812 = vmatmul.bf16.gmra.mxu0 %v377
    %v813 = vpop.f32.mrf.mxu0
    %v814 = vadd.f32 %v796, %v813
    %v815 = vpop.f32.mrf.mxu0
    %816 = vdwg.mxu0
    %817 = vmatpush.bf16.msra.mxu0 %v667
    %818 = vmatpush.bf16.msra.mxu0 %v665
    %819 = vmatpush.bf16.msra.mxu0 %v663
    %820 = vmatpush.bf16.msra.mxu0 %v661
    %821 = vmatpush.bf16.msra.mxu0 %v659
    %822 = vmatpush.bf16.msra.mxu0 %v657
    %823 = vmatpush.bf16.msra.mxu0 %v655
    %824 = vmatpush.bf16.msra.mxu0 %v653
    %825 = vmatmul.bf16.gmra.mxu0 %v373
    %v826 = vpop.f32.mrf.mxu0
    %v827 = vadd.f32 %v809, %v826
    %v828 = vpop.f32.mrf.mxu0
    %v829 = vadd.f32 %v811, %v828
    %830 = vmatmul.bf16.gmra.mxu0 %v378
    %v831 = vpop.f32.mrf.mxu0
    %v832 = vadd.f32 %v814, %v831
    %v833 = vpop.f32.mrf.mxu0
    %834 = vdwg.mxu0
    %835 = vmatpush.bf16.msra.mxu0 %v683
    %836 = vmatpush.bf16.msra.mxu0 %v681
    %837 = vmatpush.bf16.msra.mxu0 %v679
    %838 = vmatpush.bf16.msra.mxu0 %v677
    %839 = vmatpush.bf16.msra.mxu0 %v675
    %840 = vmatpush.bf16.msra.mxu0 %v673
    %841 = vmatpush.bf16.msra.mxu0 %v671
    %842 = vmatpush.bf16.msra.mxu0 %v669
    %843 = vmatmul.bf16.gmra.mxu0 %v374
    %v844 = vpop.f32.mrf.mxu0
    %v845 = vadd.f32 %v827, %v844
    %v846 = vpop.f32.mrf.mxu0
    %v847 = vadd.f32 %v829, %v846
    %848 = vmatmul.bf16.gmra.mxu0 %v379
    %v849 = vpop.f32.mrf.mxu0
    %v850 = vadd.f32 %v832, %v849
    %v851 = vpop.f32.mrf.mxu0
    %852 = vdwg.mxu0
    %853 = vmatpush.bf16.msra.mxu0 %v699
    %854 = vmatpush.bf16.msra.mxu0 %v697
    %855 = vmatpush.bf16.msra.mxu0 %v695
    %856 = vmatpush.bf16.msra.mxu0 %v693
    %857 = vmatpush.bf16.msra.mxu0 %v691
    %858 = vmatpush.bf16.msra.mxu0 %v689
    %859 = vmatpush.bf16.msra.mxu0 %v687
    %860 = vmatpush.bf16.msra.mxu0 %v685
    %861 = vmatmul.bf16.gmra.mxu0 %v375
    %v862 = vpop.f32.mrf.mxu0
    %v863 = vadd.f32 %v845, %v862
    %v864 = vpop.f32.mrf.mxu0
    %v865 = vadd.f32 %v847, %v864
    %866 = vmatmul.bf16.gmra.mxu0 %v380
    %v867 = vpop.f32.mrf.mxu0
    %v868 = vadd.f32 %v850, %v867
    %v869 = vpop.f32.mrf.mxu0
    %870 = vdwg.mxu0
    %871 = vmatpush.bf16.msra.mxu0 %v636
    %872 = vmatpush.bf16.msra.mxu0 %v634
    %873 = vmatpush.bf16.msra.mxu0 %v632
    %874 = vmatpush.bf16.msra.mxu0 %v630
    %875 = vmatpush.bf16.msra.mxu0 %v628
    %876 = vmatpush.bf16.msra.mxu0 %v626
    %877 = vmatpush.bf16.msra.mxu0 %v624
    %878 = vmatpush.bf16.msra.mxu0 %v622
    %879 = vmatmul.bf16.gmra.mxu0 %v371
    %v880 = vpop.f32.mrf.mxu0
    %v881 = vadd.f32 0.0, %v880
    %v882 = vpop.f32.mrf.mxu0
    %v883 = vadd.f32 0.0, %v882
    %884 = vmatmul.bf16.gmra.mxu0 %v376
    %v885 = vpop.f32.mrf.mxu0
    %v886 = vadd.f32 0.0, %v885
    %v887 = vpop.f32.mrf.mxu0
    %888 = vdwg.mxu0
    %889 = vmatpush.bf16.msra.mxu0 %v652
    %890 = vmatpush.bf16.msra.mxu0 %v650
    %891 = vmatpush.bf16.msra.mxu0 %v648
    %892 = vmatpush.bf16.msra.mxu0 %v646
    %893 = vmatpush.bf16.msra.mxu0 %v644
    %894 = vmatpush.bf16.msra.mxu0 %v642
    %895 = vmatpush.bf16.msra.mxu0 %v640
    %896 = vmatpush.bf16.msra.mxu0 %v638
    %897 = vmatmul.bf16.gmra.mxu0 %v372
    %v898 = vpop.f32.mrf.mxu0
    %v899 = vadd.f32 %v881, %v898
    %v900 = vpop.f32.mrf.mxu0
    %v901 = vadd.f32 %v883, %v900
    %902 = vmatmul.bf16.gmra.mxu0 %v377
    %v903 = vpop.f32.mrf.mxu0
    %v904 = vadd.f32 %v886, %v903
    %v905 = vpop.f32.mrf.mxu0
    %906 = vdwg.mxu0
    %907 = vmatpush.bf16.msra.mxu0 %v668
    %908 = vmatpush.bf16.msra.mxu0 %v666
    %909 = vmatpush.bf16.msra.mxu0 %v664
    %910 = vmatpush.bf16.msra.mxu0 %v662
    %911 = vmatpush.bf16.msra.mxu0 %v660
    %912 = vmatpush.bf16.msra.mxu0 %v658
    %913 = vmatpush.bf16.msra.mxu0 %v656
    %914 = vmatpush.bf16.msra.mxu0 %v654
    %915 = vmatmul.bf16.gmra.mxu0 %v373
    %v916 = vpop.f32.mrf.mxu0
    %v917 = vadd.f32 %v899, %v916
    %v918 = vpop.f32.mrf.mxu0
    %v919 = vadd.f32 %v901, %v918
    %920 = vmatmul.bf16.gmra.mxu0 %v378
    %v921 = vpop.f32.mrf.mxu0
    %v922 = vadd.f32 %v904, %v921
    %v923 = vpop.f32.mrf.mxu0
    %924 = vdwg.mxu0
    %925 = vmatpush.bf16.msra.mxu0 %v684
    %926 = vmatpush.bf16.msra.mxu0 %v682
    %927 = vmatpush.bf16.msra.mxu0 %v680
    %928 = vmatpush.bf16.msra.mxu0 %v678
    %929 = vmatpush.bf16.msra.mxu0 %v676
    %930 = vmatpush.bf16.msra.mxu0 %v674
    %931 = vmatpush.bf16.msra.mxu0 %v672
    %932 = vmatpush.bf16.msra.mxu0 %v670
    %933 = vmatmul.bf16.gmra.mxu0 %v374
    %v934 = vpop.f32.mrf.mxu0
    %v935 = vadd.f32 %v917, %v934
    %v936 = vpop.f32.mrf.mxu0
    %v937 = vadd.f32 %v919, %v936
    %938 = vmatmul.bf16.gmra.mxu0 %v379
    %v939 = vpop.f32.mrf.mxu0
    %v940 = vadd.f32 %v922, %v939
    %v941 = vpop.f32.mrf.mxu0
    %942 = vdwg.mxu0
    %943 = vmatpush.bf16.msra.mxu0 %v700
    %944 = vmatpush.bf16.msra.mxu0 %v698
    %945 = vmatpush.bf16.msra.mxu0 %v696
    %946 = vmatpush.bf16.msra.mxu0 %v694
    %947 = vmatpush.bf16.msra.mxu0 %v692
    %948 = vmatpush.bf16.msra.mxu0 %v690
    %949 = vmatpush.bf16.msra.mxu0 %v688
    %950 = vmatpush.bf16.msra.mxu0 %v686
    %951 = vmatmul.bf16.gmra.mxu0 %v375
    %v952 = vpop.f32.mrf.mxu0
    %v953 = vadd.f32 %v935, %v952
    %v954 = vpop.f32.mrf.mxu0
    %v955 = vadd.f32 %v937, %v954
    %956 = vmatmul.bf16.gmra.mxu0 %v380
    %v957 = vpop.f32.mrf.mxu0
    %v958 = vadd.f32 %v940, %v957
    %v959 = vpop.f32.mrf.mxu0
    %960 = vdwg.mxu0
    %v962 = vperm.slane %v325, 0
    %v963 = vperm.slane %v325, 1
    %v966 = vmul.f32 %v863, %v962
    %v967 = vmul.f32 %v953, %v963
    %v968 = vmul.f32 %v865, %v962
    %v969 = vmul.f32 %v955, %v963
    %v970 = vmul.f32 %v868, %v962
    %v971 = vmul.f32 %v958, %v963
    %v973 = vperm.slane %v326, 0
    %v974 = vperm.slane %v326, 1
    %v977 = vadd.f32 %v966, %v973
    %v978 = vadd.f32 %v967, %v974
    %v979 = vadd.f32 %v968, %v973
    %v980 = vadd.f32 %v969, %v974
    %v981 = vadd.f32 %v970, %v973
    %v982 = vadd.f32 %v971, %v974
    %v983 = vmax.f32 %v977, 0.0
    %v984 = vmax.f32 %v978, 0.0
    %v985 = vmax.f32 %v979, 0.0
    %v986 = vmax.f32 %v980, 0.0
    %v987 = vmax.f32 %v981, 0.0
    %v988 = vmax.f32 %v982, 0.0
    %v995 = vrot.slane %v983, 1
    %v996 = vrot.slane %v985, 1
    %v997 = vsel %vm332, %v995, %v996
    %v998 = vrot.slane %v984, 1
    %v999 = vrot.slane %v986, 1
    %v1000 = vsel %vm332, %v998, %v999
    %v1001 = vrot.slane %v987, 1
    %v1002 = vsel %vm332, %v996, %v1001
    %v1003 = vrot.slane %v988, 1
    %v1004 = vsel %vm332, %v999, %v1003
    %v1011 = vrot.slane %v983, 2
    %v1012 = vrot.slane %v985, 2
    %v1013 = vsel %vm341, %v1011, %v1012
    %v1014 = vrot.slane %v984, 2
    %v1015 = vrot.slane %v986, 2
    %v1016 = vsel %vm341, %v1014, %v1015
    %v1017 = vrot.slane %v987, 2
    %v1018 = vsel %vm341, %v1012, %v1017
    %v1019 = vrot.slane %v988, 2
    %v1020 = vsel %vm341, %v1015, %v1019
    %v1027 = vpack.c.bf16 %v985, %v983
    %v1028 = vpack.c.bf16 %v986, %v984
    %v1029 = vpack.c.bf16 %v1002, %v997
    %v1030 = vpack.c.bf16 %v1004, %v1000
    %v1031 = vpack.c.bf16 %v1018, %v1013
    %v1032 = vpack.c.bf16 %v1020, %v1016
    %v1033 = vpack.c.bf16 %v987, %v987
    %v1034 = vpack.c.bf16 %v988, %v988
    %v1035 = vpack.c.bf16 %v1001, %v1001
    %v1036 = vpack.c.bf16 %v1003, %v1003
    %v1037 = vpack.c.bf16 %v1017, %v1017
    %v1038 = vpack.c.bf16 %v1019, %v1019
    %v1135 = vunpack.c.l.b16 %v229
    %v1136 = vunpack.c.l.b16 %v230
    %v1137 = vunpack.c.l.b16 %v231
    %v1138 = vunpack.c.l.b16 %v232
    %v1139 = vunpack.c.l.b16 %v233
    %v1140 = vunpack.c.l.b16 %v234
    %v1141 = vunpack.c.l.b16 %v235
    %v1142 = vunpack.c.l.b16 %v236
    %v1143 = vunpack.c.l.b16 %v237
    %v1144 = vunpack.c.l.b16 %v238
    %v1145 = vunpack.c.l.b16 %v239
    %v1146 = vunpack.c.l.b16 %v240
    %v1147 = vunpack.c.l.b16 %v241
    %v1148 = vunpack.c.l.b16 %v242
    %v1149 = vunpack.c.l.b16 %v243
    %v1150 = vunpack.c.l.b16 %v244
    %v1151 = vunpack.c.l.b16 %v245
    %v1152 = vunpack.c.l.b16 %v246
    %v1153 = vunpack.c.l.b16 %v247
    %v1154 = vunpack.c.l.b16 %v248
    %v1155 = vunpack.c.l.b16 %v249
    %v1156 = vunpack.c.l.b16 %v250
    %v1157 = vunpack.c.l.b16 %v251
    %v1158 = vunpack.c.l.b16 %v252
    %v1159 = vunpack.c.l.b16 %v253
    %v1160 = vunpack.c.l.b16 %v254
    %v1161 = vunpack.c.l.b16 %v255
    %v1162 = vunpack.c.l.b16 %v256
    %v1163 = vunpack.c.l.b16 %v257
    %v1164 = vunpack.c.l.b16 %v258
    %v1165 = vunpack.c.l.b16 %v259
    %v1166 = vunpack.c.l.b16 %v260
    %v1167 = vunpack.c.l.b16 %v261
    %v1168 = vunpack.c.l.b16 %v262
    %v1169 = vunpack.c.l.b16 %v263
    %v1170 = vunpack.c.l.b16 %v264
    %v1171 = vunpack.c.l.b16 %v265
    %v1172 = vunpack.c.l.b16 %v266
    %v1173 = vunpack.c.l.b16 %v267
    %v1174 = vunpack.c.l.b16 %v268
    %v1175 = vunpack.c.l.b16 %v269
    %v1176 = vunpack.c.l.b16 %v270
    %v1177 = vunpack.c.l.b16 %v271
    %v1178 = vunpack.c.l.b16 %v272
    %v1179 = vunpack.c.l.b16 %v273
    %v1180 = vunpack.c.l.b16 %v274
    %v1181 = vunpack.c.l.b16 %v275
    %v1182 = vunpack.c.l.b16 %v276
    %v1183 = vunpack.c.l.b16 %v277
    %v1184 = vunpack.c.l.b16 %v278
    %v1185 = vunpack.c.l.b16 %v279
    %v1186 = vunpack.c.l.b16 %v280
    %v1187 = vunpack.c.l.b16 %v281
    %v1188 = vunpack.c.l.b16 %v282
    %v1189 = vunpack.c.l.b16 %v283
    %v1190 = vunpack.c.l.b16 %v284
    %v1191 = vunpack.c.l.b16 %v285
    %v1192 = vunpack.c.l.b16 %v286
    %v1193 = vunpack.c.l.b16 %v287
    %v1194 = vunpack.c.l.b16 %v288
    %v1195 = vunpack.c.l.b16 %v289
    %v1196 = vunpack.c.l.b16 %v290
    %v1197 = vunpack.c.l.b16 %v291
    %v1198 = vunpack.c.l.b16 %v292
    %v1199 = vunpack.c.l.b16 %v293
    %v1200 = vunpack.c.l.b16 %v294
    %v1201 = vunpack.c.l.b16 %v295
    %v1202 = vunpack.c.l.b16 %v296
    %v1203 = vunpack.c.l.b16 %v297
    %v1204 = vunpack.c.l.b16 %v298
    %v1205 = vunpack.c.l.b16 %v299
    %v1206 = vunpack.c.l.b16 %v300
    %v1207 = vunpack.c.l.b16 %v301
    %v1208 = vunpack.c.l.b16 %v302
    %v1209 = vunpack.c.l.b16 %v303
    %v1210 = vunpack.c.l.b16 %v304
    %v1211 = vunpack.c.l.b16 %v305
    %v1212 = vunpack.c.l.b16 %v306
    %v1213 = vunpack.c.l.b16 %v307
    %v1214 = vunpack.c.l.b16 %v308
    %v1215 = vunpack.c.l.b16 %v309
    %v1216 = vunpack.c.l.b16 %v310
    %v1217 = vunpack.c.l.b16 %v311
    %v1218 = vunpack.c.l.b16 %v312
    %v1219 = vunpack.c.l.b16 %v313
    %v1220 = vunpack.c.l.b16 %v314
    %v1221 = vunpack.c.l.b16 %v315
    %v1222 = vunpack.c.l.b16 %v316
    %v1223 = vunpack.c.l.b16 %v317
    %v1224 = vunpack.c.l.b16 %v318
    %v1225 = vunpack.c.l.b16 %v319
    %v1226 = vunpack.c.l.b16 %v320
    %v1227 = vunpack.c.l.b16 %v321
    %v1228 = vunpack.c.l.b16 %v322
    %v1229 = vunpack.c.l.b16 %v323
    %v1230 = vunpack.c.l.b16 %v324
    %v1231 = vpack.c.b16 %v1136, %v1135
    %v1232 = vpack.c.b16 %v1138, %v1137
    %v1233 = vpack.c.b16 %v1140, %v1139
    %v1234 = vpack.c.b16 %v1142, %v1141
    %v1235 = vpack.c.b16 %v1144, %v1143
    %v1236 = vpack.c.b16 %v1146, %v1145
    %v1237 = vpack.c.b16 %v1148, %v1147
    %v1238 = vpack.c.b16 %v1150, %v1149
    %v1239 = vpack.c.b16 %v1152, %v1151
    %v1240 = vpack.c.b16 %v1154, %v1153
    %v1241 = vpack.c.b16 %v1156, %v1155
    %v1242 = vpack.c.b16 %v1158, %v1157
    %v1243 = vpack.c.b16 %v1160, %v1159
    %v1244 = vpack.c.b16 %v1162, %v1161
    %v1245 = vpack.c.b16 %v1164, %v1163
    %v1246 = vpack.c.b16 %v1166, %v1165
    %v1247 = vpack.c.b16 %v1168, %v1167
    %v1248 = vpack.c.b16 %v1170, %v1169
    %v1249 = vpack.c.b16 %v1172, %v1171
    %v1250 = vpack.c.b16 %v1174, %v1173
    %v1251 = vpack.c.b16 %v1176, %v1175
    %v1252 = vpack.c.b16 %v1178, %v1177
    %v1253 = vpack.c.b16 %v1180, %v1179
    %v1254 = vpack.c.b16 %v1182, %v1181
    %v1255 = vpack.c.b16 %v1184, %v1183
    %v1256 = vpack.c.b16 %v1186, %v1185
    %v1257 = vpack.c.b16 %v1188, %v1187
    %v1258 = vpack.c.b16 %v1190, %v1189
    %v1259 = vpack.c.b16 %v1192, %v1191
    %v1260 = vpack.c.b16 %v1194, %v1193
    %v1261 = vpack.c.b16 %v1196, %v1195
    %v1262 = vpack.c.b16 %v1198, %v1197
    %v1263 = vpack.c.b16 %v1200, %v1199
    %v1264 = vpack.c.b16 %v1202, %v1201
    %v1265 = vpack.c.b16 %v1204, %v1203
    %v1266 = vpack.c.b16 %v1206, %v1205
    %v1267 = vpack.c.b16 %v1208, %v1207
    %v1268 = vpack.c.b16 %v1210, %v1209
    %v1269 = vpack.c.b16 %v1212, %v1211
    %v1270 = vpack.c.b16 %v1214, %v1213
    %v1271 = vpack.c.b16 %v1216, %v1215
    %v1272 = vpack.c.b16 %v1218, %v1217
    %v1273 = vpack.c.b16 %v1220, %v1219
    %v1274 = vpack.c.b16 %v1222, %v1221
    %v1275 = vpack.c.b16 %v1224, %v1223
    %v1276 = vpack.c.b16 %v1226, %v1225
    %v1277 = vpack.c.b16 %v1228, %v1227
    %v1278 = vpack.c.b16 %v1230, %v1229
    %1327 = vmatpush.bf16.msra.mxu0 %v1238
    %1328 = vmatpush.bf16.msra.mxu0 %v1237
    %1329 = vmatpush.bf16.msra.mxu0 %v1236
    %1330 = vmatpush.bf16.msra.mxu0 %v1235
    %1331 = vmatpush.bf16.msra.mxu0 %v1234
    %1332 = vmatpush.bf16.msra.mxu0 %v1233
    %1333 = vmatpush.bf16.msra.mxu0 %v1232
    %1334 = vmatpush.bf16.msra.mxu0 %v1231
    %1335 = vmatmul.bf16.gmra.mxu0 %v1027
    %v1336 = vpop.f32.mrf.mxu0
    %v1337 = vadd.f32 0.0, %v1336
    %v1338 = vpop.f32.mrf.mxu0
    %v1339 = vadd.f32 0.0, %v1338
    %1340 = vmatmul.bf16.gmra.mxu0 %v1033
    %v1341 = vpop.f32.mrf.mxu0
    %v1342 = vadd.f32 0.0, %v1341
    %v1343 = vpop.f32.mrf.mxu0
    %1344 = vdwg.mxu0
    %1345 = vmatpush.bf16.msra.mxu0 %v1246
    %1346 = vmatpush.bf16.msra.mxu0 %v1245
    %1347 = vmatpush.bf16.msra.mxu0 %v1244
    %1348 = vmatpush.bf16.msra.mxu0 %v1243
    %1349 = vmatpush.bf16.msra.mxu0 %v1242
    %1350 = vmatpush.bf16.msra.mxu0 %v1241
    %1351 = vmatpush.bf16.msra.mxu0 %v1240
    %1352 = vmatpush.bf16.msra.mxu0 %v1239
    %1353 = vmatmul.bf16.gmra.mxu0 %v1028
    %v1354 = vpop.f32.mrf.mxu0
    %v1355 = vadd.f32 %v1337, %v1354
    %v1356 = vpop.f32.mrf.mxu0
    %v1357 = vadd.f32 %v1339, %v1356
    %1358 = vmatmul.bf16.gmra.mxu0 %v1034
    %v1359 = vpop.f32.mrf.mxu0
    %v1360 = vadd.f32 %v1342, %v1359
    %v1361 = vpop.f32.mrf.mxu0
    %1362 = vdwg.mxu0
    %1363 = vmatpush.bf16.msra.mxu0 %v1254
    %1364 = vmatpush.bf16.msra.mxu0 %v1253
    %1365 = vmatpush.bf16.msra.mxu0 %v1252
    %1366 = vmatpush.bf16.msra.mxu0 %v1251
    %1367 = vmatpush.bf16.msra.mxu0 %v1250
    %1368 = vmatpush.bf16.msra.mxu0 %v1249
    %1369 = vmatpush.bf16.msra.mxu0 %v1248
    %1370 = vmatpush.bf16.msra.mxu0 %v1247
    %1371 = vmatmul.bf16.gmra.mxu0 %v1029
    %v1372 = vpop.f32.mrf.mxu0
    %v1373 = vadd.f32 %v1355, %v1372
    %v1374 = vpop.f32.mrf.mxu0
    %v1375 = vadd.f32 %v1357, %v1374
    %1376 = vmatmul.bf16.gmra.mxu0 %v1035
    %v1377 = vpop.f32.mrf.mxu0
    %v1378 = vadd.f32 %v1360, %v1377
    %v1379 = vpop.f32.mrf.mxu0
    %1380 = vdwg.mxu0
    %1381 = vmatpush.bf16.msra.mxu0 %v1262
    %1382 = vmatpush.bf16.msra.mxu0 %v1261
    %1383 = vmatpush.bf16.msra.mxu0 %v1260
    %1384 = vmatpush.bf16.msra.mxu0 %v1259
    %1385 = vmatpush.bf16.msra.mxu0 %v1258
    %1386 = vmatpush.bf16.msra.mxu0 %v1257
    %1387 = vmatpush.bf16.msra.mxu0 %v1256
    %1388 = vmatpush.bf16.msra.mxu0 %v1255
    %1389 = vmatmul.bf16.gmra.mxu0 %v1030
    %v1390 = vpop.f32.mrf.mxu0
    %v1391 = vadd.f32 %v1373, %v1390
    %v1392 = vpop.f32.mrf.mxu0
    %v1393 = vadd.f32 %v1375, %v1392
    %1394 = vmatmul.bf16.gmra.mxu0 %v1036
    %v1395 = vpop.f32.mrf.mxu0
    %v1396 = vadd.f32 %v1378, %v1395
    %v1397 = vpop.f32.mrf.mxu0
    %1398 = vdwg.mxu0
    %1399 = vmatpush.bf16.msra.mxu0 %v1270
    %1400 = vmatpush.bf16.msra.mxu0 %v1269
    %1401 = vmatpush.bf16.msra.mxu0 %v1268
    %1402 = vmatpush.bf16.msra.mxu0 %v1267
    %1403 = vmatpush.bf16.msra.mxu0 %v1266
    %1404 = vmatpush.bf16.msra.mxu0 %v1265
    %1405 = vmatpush.bf16.msra.mxu0 %v1264
    %1406 = vmatpush.bf16.msra.mxu0 %v1263
    %1407 = vmatmul.bf16.gmra.mxu0 %v1031
    %v1408 = vpop.f32.mrf.mxu0
    %v1409 = vadd.f32 %v1391, %v1408
    %v1410 = vpop.f32.mrf.mxu0
    %v1411 = vadd.f32 %v1393, %v1410
    %1412 = vmatmul.bf16.gmra.mxu0 %v1037
    %v1413 = vpop.f32.mrf.mxu0
    %v1414 = vadd.f32 %v1396, %v1413
    %v1415 = vpop.f32.mrf.mxu0
    %1416 = vdwg.mxu0
    %1417 = vmatpush.bf16.msra.mxu0 %v1278
    %1418 = vmatpush.bf16.msra.mxu0 %v1277
    %1419 = vmatpush.bf16.msra.mxu0 %v1276
    %1420 = vmatpush.bf16.msra.mxu0 %v1275
    %1421 = vmatpush.bf16.msra.mxu0 %v1274
    %1422 = vmatpush.bf16.msra.mxu0 %v1273
    %1423 = vmatpush.bf16.msra.mxu0 %v1272
    %1424 = vmatpush.bf16.msra.mxu0 %v1271
    %1425 = vmatmul.bf16.gmra.mxu0 %v1032
    %v1426 = vpop.f32.mrf.mxu0
    %v1427 = vadd.f32 %v1409, %v1426
    %v1428 = vpop.f32.mrf.mxu0
    %v1429 = vadd.f32 %v1411, %v1428
    %1430 = vmatmul.bf16.gmra.mxu0 %v1038
    %v1431 = vpop.f32.mrf.mxu0
    %v1432 = vadd.f32 %v1414, %v1431
    %v1433 = vpop.f32.mrf.mxu0
    %1434 = vdwg.mxu0
    %v1436 = vperm.slane %v327, 0
    %v1438 = vmul.f32 %v1427, %v1436
    %v1439 = vmul.f32 %v1429, %v1436
    %v1440 = vmul.f32 %v1432, %v1436
    %v1442 = vperm.slane %v328, 0
    %v1444 = vadd.f32 %v1438, %v1442
    %v1445 = vadd.f32 %v1439, %v1442
    %v1446 = vadd.f32 %v1440, %v1442
    %v1447 = vmax.f32 %v1444, 0.0
    %v1448 = vmax.f32 %v1445, 0.0
    %v1449 = vmax.f32 %v1446, 0.0
    %v1450 = vadd.f32 %v1447, %v1448
    %vm1451 = vcmask 1042432
    %v1452 = vsel %vm1451, %v1449, 0.0
    %v1453 = vadd.f32 %v1450, %v1452
    %v1454 = vrot.slane %v1453, 4
    %v1455 = vadd.f32 %v1453, %v1454
    %v1456 = vrot.slane %v1455, 2
    %v1457 = vadd.f32 %v1455, %v1456
    %v1458 = vrot.slane %v1457, 1
    %v1459 = vadd.f32 %v1457, %v1458
    %v1460 = vmul.f32 %v1459, 0.05263158
    %v1464 = vrot.slane %v145, 1
    %v1465 = vrot.slane %v146, 1
    %v1466 = vsel %vm332, %v1464, %v1465
    %v1467 = vrot.slane %v147, 1
    %v1468 = vsel %vm332, %v1465, %v1467
    %v1472 = vrot.slane %v145, 2
    %v1473 = vrot.slane %v146, 2
    %v1474 = vsel %vm341, %v1472, %v1473
    %v1475 = vrot.slane %v147, 2
    %v1476 = vsel %vm341, %v1473, %v1475
    %v1480 = vrot.slane %v145, 3
    %v1481 = vrot.slane %v146, 3
    %v1482 = vsel %vm350, %v1480, %v1481
    %v1483 = vrot.slane %v147, 3
    %v1484 = vsel %vm350, %v1481, %v1483
    %v1489 = vrot.slane %v145, 4
    %v1490 = vrot.slane %v146, 4
    %v1491 = vsel %vm360, %v1489, %v1490
    %v1492 = vrot.slane %v147, 4
    %v1493 = vsel %vm360, %v1490, %v1492
    %v1494 = vrot.slane %v148, 4
    %v1495 = vsel %vm360, %v1492, %v1494
    %v1499 = vpack.c.bf16 %v146, %v145
    %v1500 = vpack.c.bf16 %v1468, %v1466
    %v1501 = vpack.c.bf16 %v1476, %v1474
    %v1502 = vpack.c.bf16 %v1484, %v1482
    %v1503 = vpack.c.bf16 %v1493, %v1491
    %v1504 = vpack.c.bf16 %v147, %v147
    %v1505 = vpack.c.bf16 %v1467, %v1467
    %v1506 = vpack.c.bf16 %v1475, %v1475
    %v1507 = vpack.c.bf16 %v1483, %v1483
    %v1508 = vpack.c.bf16 %v1495, %v1495
    %1509 = vmatpush.bf16.msra.mxu0 %v635
    %1510 = vmatpush.bf16.msra.mxu0 %v633
    %1511 = vmatpush.bf16.msra.mxu0 %v631
    %1512 = vmatpush.bf16.msra.mxu0 %v629
    %1513 = vmatpush.bf16.msra.mxu0 %v627
    %1514 = vmatpush.bf16.msra.mxu0 %v625
    %1515 = vmatpush.bf16.msra.mxu0 %v623
    %1516 = vmatpush.bf16.msra.mxu0 %v621
    %1517 = vmatmul.bf16.gmra.mxu0 %v1499
    %v1518 = vpop.f32.mrf.mxu0
    %v1519 = vadd.f32 0.0, %v1518
    %v1520 = vpop.f32.mrf.mxu0
    %v1521 = vadd.f32 0.0, %v1520
    %1522 = vmatmul.bf16.gmra.mxu0 %v1504
    %v1523 = vpop.f32.mrf.mxu0
    %v1524 = vadd.f32 0.0, %v1523
    %v1525 = vpop.f32.mrf.mxu0
    %1526 = vdwg.mxu0
    %1527 = vmatpush.bf16.msra.mxu0 %v651
    %1528 = vmatpush.bf16.msra.mxu0 %v649
    %1529 = vmatpush.bf16.msra.mxu0 %v647
    %1530 = vmatpush.bf16.msra.mxu0 %v645
    %1531 = vmatpush.bf16.msra.mxu0 %v643
    %1532 = vmatpush.bf16.msra.mxu0 %v641
    %1533 = vmatpush.bf16.msra.mxu0 %v639
    %1534 = vmatpush.bf16.msra.mxu0 %v637
    %1535 = vmatmul.bf16.gmra.mxu0 %v1500
    %v1536 = vpop.f32.mrf.mxu0
    %v1537 = vadd.f32 %v1519, %v1536
    %v1538 = vpop.f32.mrf.mxu0
    %v1539 = vadd.f32 %v1521, %v1538
    %1540 = vmatmul.bf16.gmra.mxu0 %v1505
    %v1541 = vpop.f32.mrf.mxu0
    %v1542 = vadd.f32 %v1524, %v1541
    %v1543 = vpop.f32.mrf.mxu0
    %1544 = vdwg.mxu0
    %1545 = vmatpush.bf16.msra.mxu0 %v667
    %1546 = vmatpush.bf16.msra.mxu0 %v665
    %1547 = vmatpush.bf16.msra.mxu0 %v663
    %1548 = vmatpush.bf16.msra.mxu0 %v661
    %1549 = vmatpush.bf16.msra.mxu0 %v659
    %1550 = vmatpush.bf16.msra.mxu0 %v657
    %1551 = vmatpush.bf16.msra.mxu0 %v655
    %1552 = vmatpush.bf16.msra.mxu0 %v653
    %1553 = vmatmul.bf16.gmra.mxu0 %v1501
    %v1554 = vpop.f32.mrf.mxu0
    %v1555 = vadd.f32 %v1537, %v1554
    %v1556 = vpop.f32.mrf.mxu0
    %v1557 = vadd.f32 %v1539, %v1556
    %1558 = vmatmul.bf16.gmra.mxu0 %v1506
    %v1559 = vpop.f32.mrf.mxu0
    %v1560 = vadd.f32 %v1542, %v1559
    %v1561 = vpop.f32.mrf.mxu0
    %1562 = vdwg.mxu0
    %1563 = vmatpush.bf16.msra.mxu0 %v683
    %1564 = vmatpush.bf16.msra.mxu0 %v681
    %1565 = vmatpush.bf16.msra.mxu0 %v679
    %1566 = vmatpush.bf16.msra.mxu0 %v677
    %1567 = vmatpush.bf16.msra.mxu0 %v675
    %1568 = vmatpush.bf16.msra.mxu0 %v673
    %1569 = vmatpush.bf16.msra.mxu0 %v671
    %1570 = vmatpush.bf16.msra.mxu0 %v669
    %1571 = vmatmul.bf16.gmra.mxu0 %v1502
    %v1572 = vpop.f32.mrf.mxu0
    %v1573 = vadd.f32 %v1555, %v1572
    %v1574 = vpop.f32.mrf.mxu0
    %v1575 = vadd.f32 %v1557, %v1574
    %1576 = vmatmul.bf16.gmra.mxu0 %v1507
    %v1577 = vpop.f32.mrf.mxu0
    %v1578 = vadd.f32 %v1560, %v1577
    %v1579 = vpop.f32.mrf.mxu0
    %1580 = vdwg.mxu0
    %1581 = vmatpush.bf16.msra.mxu0 %v699
    %1582 = vmatpush.bf16.msra.mxu0 %v697
    %1583 = vmatpush.bf16.msra.mxu0 %v695
    %1584 = vmatpush.bf16.msra.mxu0 %v693
    %1585 = vmatpush.bf16.msra.mxu0 %v691
    %1586 = vmatpush.bf16.msra.mxu0 %v689
    %1587 = vmatpush.bf16.msra.mxu0 %v687
    %1588 = vmatpush.bf16.msra.mxu0 %v685
    %1589 = vmatmul.bf16.gmra.mxu0 %v1503
    %v1590 = vpop.f32.mrf.mxu0
    %v1591 = vadd.f32 %v1573, %v1590
    %v1592 = vpop.f32.mrf.mxu0
    %v1593 = vadd.f32 %v1575, %v1592
    %1594 = vmatmul.bf16.gmra.mxu0 %v1508
    %v1595 = vpop.f32.mrf.mxu0
    %v1596 = vadd.f32 %v1578, %v1595
    %v1597 = vpop.f32.mrf.mxu0
    %1598 = vdwg.mxu0
    %1599 = vmatpush.bf16.msra.mxu0 %v636
    %1600 = vmatpush.bf16.msra.mxu0 %v634
    %1601 = vmatpush.bf16.msra.mxu0 %v632
    %1602 = vmatpush.bf16.msra.mxu0 %v630
    %1603 = vmatpush.bf16.msra.mxu0 %v628
    %1604 = vmatpush.bf16.msra.mxu0 %v626
    %1605 = vmatpush.bf16.msra.mxu0 %v624
    %1606 = vmatpush.bf16.msra.mxu0 %v622
    %1607 = vmatmul.bf16.gmra.mxu0 %v1499
    %v1608 = vpop.f32.mrf.mxu0
    %v1609 = vadd.f32 0.0, %v1608
    %v1610 = vpop.f32.mrf.mxu0
    %v1611 = vadd.f32 0.0, %v1610
    %1612 = vmatmul.bf16.gmra.mxu0 %v1504
    %v1613 = vpop.f32.mrf.mxu0
    %v1614 = vadd.f32 0.0, %v1613
    %v1615 = vpop.f32.mrf.mxu0
    %1616 = vdwg.mxu0
    %1617 = vmatpush.bf16.msra.mxu0 %v652
    %1618 = vmatpush.bf16.msra.mxu0 %v650
    %1619 = vmatpush.bf16.msra.mxu0 %v648
    %1620 = vmatpush.bf16.msra.mxu0 %v646
    %1621 = vmatpush.bf16.msra.mxu0 %v644
    %1622 = vmatpush.bf16.msra.mxu0 %v642
    %1623 = vmatpush.bf16.msra.mxu0 %v640
    %1624 = vmatpush.bf16.msra.mxu0 %v638
    %1625 = vmatmul.bf16.gmra.mxu0 %v1500
    %v1626 = vpop.f32.mrf.mxu0
    %v1627 = vadd.f32 %v1609, %v1626
    %v1628 = vpop.f32.mrf.mxu0
    %v1629 = vadd.f32 %v1611, %v1628
    %1630 = vmatmul.bf16.gmra.mxu0 %v1505
    %v1631 = vpop.f32.mrf.mxu0
    %v1632 = vadd.f32 %v1614, %v1631
    %v1633 = vpop.f32.mrf.mxu0
    %1634 = vdwg.mxu0
    %1635 = vmatpush.bf16.msra.mxu0 %v668
    %1636 = vmatpush.bf16.msra.mxu0 %v666
    %1637 = vmatpush.bf16.msra.mxu0 %v664
    %1638 = vmatpush.bf16.msra.mxu0 %v662
    %1639 = vmatpush.bf16.msra.mxu0 %v660
    %1640 = vmatpush.bf16.msra.mxu0 %v658
    %1641 = vmatpush.bf16.msra.mxu0 %v656
    %1642 = vmatpush.bf16.msra.mxu0 %v654
    %1643 = vmatmul.bf16.gmra.mxu0 %v1501
    %v1644 = vpop.f32.mrf.mxu0
    %v1645 = vadd.f32 %v1627, %v1644
    %v1646 = vpop.f32.mrf.mxu0
    %v1647 = vadd.f32 %v1629, %v1646
    %1648 = vmatmul.bf16.gmra.mxu0 %v1506
    %v1649 = vpop.f32.mrf.mxu0
    %v1650 = vadd.f32 %v1632, %v1649
    %v1651 = vpop.f32.mrf.mxu0
    %1652 = vdwg.mxu0
    %1653 = vmatpush.bf16.msra.mxu0 %v684
    %1654 = vmatpush.bf16.msra.mxu0 %v682
    %1655 = vmatpush.bf16.msra.mxu0 %v680
    %1656 = vmatpush.bf16.msra.mxu0 %v678
    %1657 = vmatpush.bf16.msra.mxu0 %v676
    %1658 = vmatpush.bf16.msra.mxu0 %v674
    %1659 = vmatpush.bf16.msra.mxu0 %v672
    %1660 = vmatpush.bf16.msra.mxu0 %v670
    %1661 = vmatmul.bf16.gmra.mxu0 %v1502
    %v1662 = vpop.f32.mrf.mxu0
    %v1663 = vadd.f32 %v1645, %v1662
    %v1664 = vpop.f32.mrf.mxu0
    %v1665 = vadd.f32 %v1647, %v1664
    %1666 = vmatmul.bf16.gmra.mxu0 %v1507
    %v1667 = vpop.f32.mrf.mxu0
    %v1668 = vadd.f32 %v1650, %v1667
    %v1669 = vpop.f32.mrf.mxu0
    %1670 = vdwg.mxu0
    %1671 = vmatpush.bf16.msra.mxu0 %v700
    %1672 = vmatpush.bf16.msra.mxu0 %v698
    %1673 = vmatpush.bf16.msra.mxu0 %v696
    %1674 = vmatpush.bf16.msra.mxu0 %v694
    %1675 = vmatpush.bf16.msra.mxu0 %v692
    %1676 = vmatpush.bf16.msra.mxu0 %v690
    %1677 = vmatpush.bf16.msra.mxu0 %v688
    %1678 = vmatpush.bf16.msra.mxu0 %v686
    %1679 = vmatmul.bf16.gmra.mxu0 %v1503
    %v1680 = vpop.f32.mrf.mxu0
    %v1681 = vadd.f32 %v1663, %v1680
    %v1682 = vpop.f32.mrf.mxu0
    %v1683 = vadd.f32 %v1665, %v1682
    %1684 = vmatmul.bf16.gmra.mxu0 %v1508
    %v1685 = vpop.f32.mrf.mxu0
    %v1686 = vadd.f32 %v1668, %v1685
    %v1687 = vpop.f32.mrf.mxu0
    %1688 = vdwg.mxu0
    %v1689 = vmul.f32 %v1591, %v962
    %v1690 = vmul.f32 %v1681, %v963
    %v1691 = vmul.f32 %v1593, %v962
    %v1692 = vmul.f32 %v1683, %v963
    %v1693 = vmul.f32 %v1596, %v962
    %v1694 = vmul.f32 %v1686, %v963
    %v1695 = vadd.f32 %v1689, %v973
    %v1696 = vadd.f32 %v1690, %v974
    %v1697 = vadd.f32 %v1691, %v973
    %v1698 = vadd.f32 %v1692, %v974
    %v1699 = vadd.f32 %v1693, %v973
    %v1700 = vadd.f32 %v1694, %v974
    %v1701 = vmax.f32 %v1695, 0.0
    %v1702 = vmax.f32 %v1696, 0.0
    %v1703 = vmax.f32 %v1697, 0.0
    %v1704 = vmax.f32 %v1698, 0.0
    %v1705 = vmax.f32 %v1699, 0.0
    %v1706 = vmax.f32 %v1700, 0.0
    %v1713 = vrot.slane %v1701, 1
    %v1714 = vrot.slane %v1703, 1
    %v1715 = vsel %vm332, %v1713, %v1714
    %v1716 = vrot.slane %v1702, 1
    %v1717 = vrot.slane %v1704, 1
    %v1718 = vsel %vm332, %v1716, %v1717
    %v1719 = vrot.slane %v1705, 1
    %v1720 = vsel %vm332, %v1714, %v1719
    %v1721 = vrot.slane %v1706, 1
    %v1722 = vsel %vm332, %v1717, %v1721
    %v1729 = vrot.slane %v1701, 2
    %v1730 = vrot.slane %v1703, 2
    %v1731 = vsel %vm341, %v1729, %v1730
    %v1732 = vrot.slane %v1702, 2
    %v1733 = vrot.slane %v1704, 2
    %v1734 = vsel %vm341, %v1732, %v1733
    %v1735 = vrot.slane %v1705, 2
    %v1736 = vsel %vm341, %v1730, %v1735
    %v1737 = vrot.slane %v1706, 2
    %v1738 = vsel %vm341, %v1733, %v1737
    %v1745 = vpack.c.bf16 %v1703, %v1701
    %v1746 = vpack.c.bf16 %v1704, %v1702
    %v1747 = vpack.c.bf16 %v1720, %v1715
    %v1748 = vpack.c.bf16 %v1722, %v1718
    %v1749 = vpack.c.bf16 %v1736, %v1731
    %v1750 = vpack.c.bf16 %v1738, %v1734
    %v1751 = vpack.c.bf16 %v1705, %v1705
    %v1752 = vpack.c.bf16 %v1706, %v1706
    %v1753 = vpack.c.bf16 %v1719, %v1719
    %v1754 = vpack.c.bf16 %v1721, %v1721
    %v1755 = vpack.c.bf16 %v1735, %v1735
    %v1756 = vpack.c.bf16 %v1737, %v1737
    %1757 = vmatpush.bf16.msra.mxu0 %v1238
    %1758 = vmatpush.bf16.msra.mxu0 %v1237
    %1759 = vmatpush.bf16.msra.mxu0 %v1236
    %1760 = vmatpush.bf16.msra.mxu0 %v1235
    %1761 = vmatpush.bf16.msra.mxu0 %v1234
    %1762 = vmatpush.bf16.msra.mxu0 %v1233
    %1763 = vmatpush.bf16.msra.mxu0 %v1232
    %1764 = vmatpush.bf16.msra.mxu0 %v1231
    %1765 = vmatmul.bf16.gmra.mxu0 %v1745
    %v1766 = vpop.f32.mrf.mxu0
    %v1767 = vadd.f32 0.0, %v1766
    %v1768 = vpop.f32.mrf.mxu0
    %v1769 = vadd.f32 0.0, %v1768
    %1770 = vmatmul.bf16.gmra.mxu0 %v1751
    %v1771 = vpop.f32.mrf.mxu0
    %v1772 = vadd.f32 0.0, %v1771
    %v1773 = vpop.f32.mrf.mxu0
    %1774 = vdwg.mxu0
    %1775 = vmatpush.bf16.msra.mxu0 %v1246
    %1776 = vmatpush.bf16.msra.mxu0 %v1245
    %1777 = vmatpush.bf16.msra.mxu0 %v1244
    %1778 = vmatpush.bf16.msra.mxu0 %v1243
    %1779 = vmatpush.bf16.msra.mxu0 %v1242
    %1780 = vmatpush.bf16.msra.mxu0 %v1241
    %1781 = vmatpush.bf16.msra.mxu0 %v1240
    %1782 = vmatpush.bf16.msra.mxu0 %v1239
    %1783 = vmatmul.bf16.gmra.mxu0 %v1746
    %v1784 = vpop.f32.mrf.mxu0
    %v1785 = vadd.f32 %v1767, %v1784
    %v1786 = vpop.f32.mrf.mxu0
    %v1787 = vadd.f32 %v1769, %v1786
    %1788 = vmatmul.bf16.gmra.mxu0 %v1752
    %v1789 = vpop.f32.mrf.mxu0
    %v1790 = vadd.f32 %v1772, %v1789
    %v1791 = vpop.f32.mrf.mxu0
    %1792 = vdwg.mxu0
    %1793 = vmatpush.bf16.msra.mxu0 %v1254
    %1794 = vmatpush.bf16.msra.mxu0 %v1253
    %1795 = vmatpush.bf16.msra.mxu0 %v1252
    %1796 = vmatpush.bf16.msra.mxu0 %v1251
    %1797 = vmatpush.bf16.msra.mxu0 %v1250
    %1798 = vmatpush.bf16.msra.mxu0 %v1249
    %1799 = vmatpush.bf16.msra.mxu0 %v1248
    %1800 = vmatpush.bf16.msra.mxu0 %v1247
    %1801 = vmatmul.bf16.gmra.mxu0 %v1747
    %v1802 = vpop.f32.mrf.mxu0
    %v1803 = vadd.f32 %v1785, %v1802
    %v1804 = vpop.f32.mrf.mxu0
    %v1805 = vadd.f32 %v1787, %v1804
    %1806 = vmatmul.bf16.gmra.mxu0 %v1753
    %v1807 = vpop.f32.mrf.mxu0
    %v1808 = vadd.f32 %v1790, %v1807
    %v1809 = vpop.f32.mrf.mxu0
    %1810 = vdwg.mxu0
    %1811 = vmatpush.bf16.msra.mxu0 %v1262
    %1812 = vmatpush.bf16.msra.mxu0 %v1261
    %1813 = vmatpush.bf16.msra.mxu0 %v1260
    %1814 = vmatpush.bf16.msra.mxu0 %v1259
    %1815 = vmatpush.bf16.msra.mxu0 %v1258
    %1816 = vmatpush.bf16.msra.mxu0 %v1257
    %1817 = vmatpush.bf16.msra.mxu0 %v1256
    %1818 = vmatpush.bf16.msra.mxu0 %v1255
    %1819 = vmatmul.bf16.gmra.mxu0 %v1748
    %v1820 = vpop.f32.mrf.mxu0
    %v1821 = vadd.f32 %v1803, %v1820
    %v1822 = vpop.f32.mrf.mxu0
    %v1823 = vadd.f32 %v1805, %v1822
    %1824 = vmatmul.bf16.gmra.mxu0 %v1754
    %v1825 = vpop.f32.mrf.mxu0
    %v1826 = vadd.f32 %v1808, %v1825
    %v1827 = vpop.f32.mrf.mxu0
    %1828 = vdwg.mxu0
    %1829 = vmatpush.bf16.msra.mxu0 %v1270
    %1830 = vmatpush.bf16.msra.mxu0 %v1269
    %1831 = vmatpush.bf16.msra.mxu0 %v1268
    %1832 = vmatpush.bf16.msra.mxu0 %v1267
    %1833 = vmatpush.bf16.msra.mxu0 %v1266
    %1834 = vmatpush.bf16.msra.mxu0 %v1265
    %1835 = vmatpush.bf16.msra.mxu0 %v1264
    %1836 = vmatpush.bf16.msra.mxu0 %v1263
    %1837 = vmatmul.bf16.gmra.mxu0 %v1749
    %v1838 = vpop.f32.mrf.mxu0
    %v1839 = vadd.f32 %v1821, %v1838
    %v1840 = vpop.f32.mrf.mxu0
    %v1841 = vadd.f32 %v1823, %v1840
    %1842 = vmatmul.bf16.gmra.mxu0 %v1755
    %v1843 = vpop.f32.mrf.mxu0
    %v1844 = vadd.f32 %v1826, %v1843
    %v1845 = vpop.f32.mrf.mxu0
    %1846 = vdwg.mxu0
    %1847 = vmatpush.bf16.msra.mxu0 %v1278
    %1848 = vmatpush.bf16.msra.mxu0 %v1277
    %1849 = vmatpush.bf16.msra.mxu0 %v1276
    %1850 = vmatpush.bf16.msra.mxu0 %v1275
    %1851 = vmatpush.bf16.msra.mxu0 %v1274
    %1852 = vmatpush.bf16.msra.mxu0 %v1273
    %1853 = vmatpush.bf16.msra.mxu0 %v1272
    %1854 = vmatpush.bf16.msra.mxu0 %v1271
    %1855 = vmatmul.bf16.gmra.mxu0 %v1750
    %v1856 = vpop.f32.mrf.mxu0
    %v1857 = vadd.f32 %v1839, %v1856
    %v1858 = vpop.f32.mrf.mxu0
    %v1859 = vadd.f32 %v1841, %v1858
    %1860 = vmatmul.bf16.gmra.mxu0 %v1756
    %v1861 = vpop.f32.mrf.mxu0
    %v1862 = vadd.f32 %v1844, %v1861
    %v1863 = vpop.f32.mrf.mxu0
    %1864 = vdwg.mxu0
    %v1865 = vmul.f32 %v1857, %v1436
    %v1866 = vmul.f32 %v1859, %v1436
    %v1867 = vmul.f32 %v1862, %v1436
    %v1868 = vadd.f32 %v1865, %v1442
    %v1869 = vadd.f32 %v1866, %v1442
    %v1870 = vadd.f32 %v1867, %v1442
    %v1871 = vmax.f32 %v1868, 0.0
    %v1872 = vmax.f32 %v1869, 0.0
    %v1873 = vmax.f32 %v1870, 0.0
    %v1874 = vadd.f32 %v1871, %v1872
    %v1875 = vsel %vm1451, %v1873, 0.0
    %v1876 = vadd.f32 %v1874, %v1875
    %v1877 = vrot.slane %v1876, 4
    %v1878 = vadd.f32 %v1876, %v1877
    %v1879 = vrot.slane %v1878, 2
    %v1880 = vadd.f32 %v1878, %v1879
    %v1881 = vrot.slane %v1880, 1
    %v1882 = vadd.f32 %v1880, %v1881
    %v1883 = vmul.f32 %v1882, 0.05263158
    %vm1884 = vcmask 1040384
    %v1885 = vsel %vm1884, %v1460, %v1883
    %v1886 = vld [vmem:[%s10] sm:$0xff]
    %v1887 = vld [vmem:[%s10 + $0x8] sm:$0xff]
    %v1888 = vld [vmem:[%s10 + $0x10] sm:$0xff]
    %v1889 = vld [vmem:[%s10 + $0x18] sm:$0xff]
    %v1890 = vld [vmem:[%s10 + $0x20] sm:$0xff]
    %v1891 = vld [vmem:[%s10 + $0x28] sm:$0xff]
    %v1892 = vld [vmem:[%s10 + $0x30] sm:$0xff]
    %v1893 = vld [vmem:[%s10 + $0x38] sm:$0xff]
    %v1894 = vld [vmem:[%s10 + $0x40] sm:$0xff]
    %v1895 = vld [vmem:[%s10 + $0x48] sm:$0xff]
    %v1896 = vld [vmem:[%s10 + $0x50] sm:$0xff]
    %v1897 = vld [vmem:[%s10 + $0x58] sm:$0xff]
    %v1898 = vld [vmem:[%s10 + $0x60] sm:$0xff]
    %v1899 = vld [vmem:[%s10 + $0x68] sm:$0xff]
    %v1900 = vld [vmem:[%s10 + $0x70] sm:$0xff]
    %v1901 = vld [vmem:[%s10 + $0x78] sm:$0xff]
    %v1902 = vld [vmem:[%s11] sm:$0x1]
    %v1904 = vperm.slane %v1902, 0
    %1906 = vmatpush.msra.mxu0 %v1901
    %1907 = vmatpush.msra.mxu0 %v1900
    %1908 = vmatpush.msra.mxu0 %v1899
    %1909 = vmatpush.msra.mxu0 %v1898
    %1910 = vmatpush.msra.mxu0 %v1897
    %1911 = vmatpush.msra.mxu0 %v1896
    %1912 = vmatpush.msra.mxu0 %v1895
    %1913 = vmatpush.msra.mxu0 %v1894
    %1914 = vmatpush.msra.mxu0 %v1893
    %1915 = vmatpush.msra.mxu0 %v1892
    %1916 = vmatpush.msra.mxu0 %v1891
    %1917 = vmatpush.msra.mxu0 %v1890
    %1918 = vmatpush.msra.mxu0 %v1889
    %1919 = vmatpush.msra.mxu0 %v1888
    %1920 = vmatpush.msra.mxu0 %v1887
    %1921 = vmatpush.msra.mxu0 %v1886
    %1922 = vmatmul.f32.gmra.mxu0 %v1885
    %v1923 = vpop.f32.mrf.mxu0
    %v1924 = vadd.f32 %v1904, %v1923
    %1925 = vdwg.mxu0
    %vm1926 = vcmask 74752
    %1927 = vst.msk [vmem:[#allocation2] sm:$0x3] %vm1926, %v1924
    // Predicated region
    $region50: #{cnn_forward_pallas.1} parent=1 // pred_check
      _
    $region51: #{cnn_forward_pallas.1} parent=1 // pred_check_branch
      %1929 = sbr.rel (0) target = $region53
    $region52: #{cnn_forward_pallas.1} parent=1 // pred_region
      %1931 = vsyncadd [#allocation3], 0
      %s1933 = sshll.u32 [#allocation2], 4
      %s1934 = int_to_ptr.vmem [resolvable:$true] %s1933
      %s1935 = sshll.u32 %s12, 4
      %s1936 = int_to_ptr.hbm [resolvable:$true] %s1935
      %1938 = dma.vmem_to_hbm [thread:$0]  %s1934, 32, %s1936, [#allocation3]
    $region53: #{cnn_forward_pallas.1} parent=1 // pred_fallthru
      _
    // Predicated region
    $region54: #{cnn_forward_pallas.1} parent=1 // pred_check
      _
    $region55: #{cnn_forward_pallas.1} parent=1 // pred_check_branch
      %1940 = sbr.rel (0) target = $region57
    $region56: #{cnn_forward_pallas.1} parent=1 // pred_region
      %1942 = dma.done [#allocation3], 32
    $region57: #{cnn_forward_pallas.1} parent=1 // pred_fallthru
      _
    %1943 = vsyncpa [#allocation3], 1

</llo_original>
